<compile_context>
chip_gen: v7x
topology: tpu7x:2x2x1
jax: 0.10.0
libtpu: 0.0.40
codegen_flags: <defaults>
</compile_context>

<pallas_src>
import functools
import math

import jax
import jax.numpy as jnp
from jax import lax
from jax.experimental import pallas as pl
from jax.experimental.pallas import tpu as pltpu


def prepare_params(params, nhead):
    """One-time host-side weight prep (call at init, NOT per forward).

    Pre-transposes every nn.Linear weight (x @ W.T -> x @ W_t), splits the
    Q/K/V/out weights per head, and folds the 1/sqrt(d_k) attention scale into
    the Q projection.
    """
    wq, bq, wk, bk, wv, bv, wo, bo = params
    d_model = wq.shape[0]
    d_k = d_model // nhead
    scale = 1.0 / math.sqrt(d_k)

    def split_heads_in(w_t):                       # (D, D) -> (H, D, d_k)
        return w_t.reshape(d_model, nhead, d_k).transpose(1, 0, 2)

    wq_h = split_heads_in(wq.T * scale)            # scale folded into Q weights
    wk_h = split_heads_in(wk.T)
    wv_h = split_heads_in(wv.T)
    bq_h = (bq * scale).reshape(nhead, 1, d_k)     # scale folded into Q bias
    bk_h = bk.reshape(nhead, 1, d_k)
    bv_h = bv.reshape(nhead, 1, d_k)
    wo_h = wo.T.reshape(nhead, d_k, d_model)       # per-head rows of wo.T
    bo_2d = bo.reshape(1, d_model)
    return (wq_h, wk_h, wv_h, bq_h, bk_h, bv_h, wo_h, bo_2d)


@functools.partial(jax.jit, static_argnames=("nhead",))
def multi_head_attention(q, k, v, prepared, nhead):
    """Fused MHA forward.  attn_mask is not supported (None path only)."""
    # TODO(synk): attn_mask (masked_fill) branch not implemented -- the module
    # is exercised with attn_mask=None here.
    B, S, D = q.shape
    H = nhead
    assert D % H == 0, "d_model must be divisible by nhead"
    d_k = D // H
    wq_h, wk_h, wv_h, bq_h, bk_h, bv_h, wo_h, bo_2d = prepared

    def kernel(q_ref, k_ref, v_ref, wq_ref, wk_ref, wv_ref,
               bq_ref, bk_ref, bv_ref, wo_ref, bo_ref, out_ref, attn_ref):
        xq = q_ref[0]                                # (S, D)
        xk = k_ref[0]
        xv = v_ref[0]
        out_acc = None
        # Heads were split on the host via the (H, D, d_k) weight layout, so
        # the kernel never slices/concats activations across lanes.  H is
        # small and static -> unrolled; at realistic sizes this becomes a
        # grid axis / flash-style loop instead.
        for h in range(H):
            qp = jnp.dot(xq, wq_ref[h],
                         preferred_element_type=jnp.float32) + bq_ref[h]   # (S, d_k)
            kp = jnp.dot(xk, wk_ref[h],
                         preferred_element_type=jnp.float32) + bk_ref[h]
            vp = jnp.dot(xv, wv_ref[h],
                         preferred_element_type=jnp.float32) + bv_ref[h]
            # qp @ kp.T without materializing a transpose (scale pre-folded).
            s = lax.dot_general(qp, kp, (((1,), (1,)), ((), ())),
                                preferred_element_type=jnp.float32)        # (S, S)
            m = jnp.max(s, axis=-1, keepdims=True)
            e = jnp.exp(s - m)
            denom = jnp.sum(e, axis=-1, keepdims=True)
            # EUP reciprocal + one Newton step -> f32 accuracy, VPU stays free.
            r = pl.reciprocal(denom, approx=True)
            r = r * (2.0 - denom * r)
            attn = e * r
            attn_ref[0, h] = attn
            ctx = jnp.dot(attn, vp, preferred_element_type=jnp.float32)    # (S, d_k)
            term = jnp.dot(ctx, wo_ref[h],
                           preferred_element_type=jnp.float32)             # (S, D)
            out_acc = term if out_acc is None else out_acc + term
        out_ref[0] = out_acc + bo_ref[...]

    batch_blk = lambda b: (b, 0, 0)
    const3 = lambda b: (0, 0, 0)
    const2 = lambda b: (0, 0)

    out, attn = pl.pallas_call(
        kernel,
        out_shape=(
            jax.ShapeDtypeStruct((B, S, D), jnp.float32),
            jax.ShapeDtypeStruct((B, H, S, S), jnp.float32),
        ),
        grid=(B,),
        in_specs=[
            pl.BlockSpec((1, S, D), batch_blk),        # q
            pl.BlockSpec((1, S, D), batch_blk),        # k
            pl.BlockSpec((1, S, D), batch_blk),        # v
            pl.BlockSpec((H, D, d_k), const3),         # wq (per head, transposed)
            pl.BlockSpec((H, D, d_k), const3),         # wk
            pl.BlockSpec((H, D, d_k), const3),         # wv
            pl.BlockSpec((H, 1, d_k), const3),         # bq (scaled)
            pl.BlockSpec((H, 1, d_k), const3),         # bk
            pl.BlockSpec((H, 1, d_k), const3),         # bv
            pl.BlockSpec((H, d_k, D), const3),         # wo (per head, transposed)
            pl.BlockSpec((1, D), const2),              # bo
        ],
        out_specs=(
            pl.BlockSpec((1, S, D), batch_blk),
            pl.BlockSpec((1, H, S, S), lambda b: (b, 0, 0, 0)),
        ),
        compiler_params=pltpu.CompilerParams(
            dimension_semantics=("parallel",)),
    )(q, k, v, wq_h, wk_h, wv_h, bq_h, bk_h, bv_h, wo_h, bo_2d)
    return out, attn


def reference_mha(q, k, v, params, nhead):
    """Pure-JAX reference mirroring the PyTorch forward exactly."""
    wq, bq, wk, bk, wv, bv, wo, bo = params
    B, S, D = q.shape
    d_k = D // nhead

    def proj(x, w, b):
        return x @ w.T + b

    qh = proj(q, wq, bq).reshape(B, S, nhead, d_k).transpose(0, 2, 1, 3)
    kh = proj(k, wk, bk).reshape(B, S, nhead, d_k).transpose(0, 2, 1, 3)
    vh = proj(v, wv, bv).reshape(B, S, nhead, d_k).transpose(0, 2, 1, 3)

    scores = jnp.einsum('bhsd,bhtd->bhst', qh, kh) / math.sqrt(d_k)
    attn = jax.nn.softmax(scores, axis=-1)
    ctx = jnp.einsum('bhst,bhtd->bhsd', attn, vh)
    ctx = ctx.transpose(0, 2, 1, 3).reshape(B, S, D)
    out = ctx @ wo.T + bo
    return out, attn


if __name__ == "__main__":
    # Small shapes consistent with the module: batch=2, seq=8, d_model=32, nhead=4
    B, S, D, H = 2, 8, 32, 4

    key = jax.random.PRNGKey(0)
    keys = jax.random.split(key, 12)

    bound = 1.0 / math.sqrt(D)  # torch.nn.Linear default init range
    wq = jax.random.uniform(keys[0], (D, D), jnp.float32, -bound, bound)
    bq = jax.random.uniform(keys[1], (D,), jnp.float32, -bound, bound)
    wk = jax.random.uniform(keys[2], (D, D), jnp.float32, -bound, bound)
    bk = jax.random.uniform(keys[3], (D,), jnp.float32, -bound, bound)
    wv = jax.random.uniform(keys[4], (D, D), jnp.float32, -bound, bound)
    bv = jax.random.uniform(keys[5], (D,), jnp.float32, -bound, bound)
    wo = jax.random.uniform(keys[6], (D, D), jnp.float32, -bound, bound)
    bo = jax.random.uniform(keys[7], (D,), jnp.float32, -bound, bound)
    params = (wq, bq, wk, bk, wv, bv, wo, bo)

    q = jax.random.normal(keys[8], (B, S, D), jnp.float32)
    k = jax.random.normal(keys[9], (B, S, D), jnp.float32)
    v = jax.random.normal(keys[10], (B, S, D), jnp.float32)

    # One-time weight prep (init time), hoisted out of the per-call path.
    prepared = prepare_params(params, H)

    out, attn = multi_head_attention(q, k, v, prepared, nhead=H)
    out = jax.block_until_ready(out)
    attn = jax.block_until_ready(attn)

    ref_out, ref_attn = reference_mha(q, k, v, params, H)
    assert out.shape == (B, S, D) and attn.shape == (B, H, S, S)
    assert jnp.allclose(out, ref_out, atol=1e-4, rtol=1e-4)
    assert jnp.allclose(attn, ref_attn, atol=1e-4, rtol=1e-4)

    print("KERNEL_OK")
</pallas_src>

<mosaic_0001>
module attributes {stable_mosaic.version = 11 : i64} {
  func.func @kernel(%arg0: i32, %arg1: memref<1x8x32xf32, #tpu.memory_space<vmem>>, %arg2: memref<1x8x32xf32, #tpu.memory_space<vmem>>, %arg3: memref<1x8x32xf32, #tpu.memory_space<vmem>>, %arg4: memref<4x32x8xf32, #tpu.memory_space<vmem>>, %arg5: memref<4x32x8xf32, #tpu.memory_space<vmem>>, %arg6: memref<4x32x8xf32, #tpu.memory_space<vmem>>, %arg7: memref<4x1x8xf32, #tpu.memory_space<vmem>>, %arg8: memref<4x1x8xf32, #tpu.memory_space<vmem>>, %arg9: memref<4x1x8xf32, #tpu.memory_space<vmem>>, %arg10: memref<4x8x32xf32, #tpu.memory_space<vmem>>, %arg11: memref<1x32xf32, #tpu.memory_space<vmem>>, %arg12: memref<1x8x32xf32, #tpu.memory_space<vmem>>, %arg13: memref<1x4x8x8xf32, #tpu.memory_space<vmem>>) attributes {dimension_semantics = [#tpu.dimension_semantics<parallel>], iteration_bounds = array<i64: 2>, scalar_prefetch = 0 : i64, scratch_operands = 0 : i64, tpu.core_type = #tpu.core_type<tc>, window_params = [{transform_indices = @transform_0, window_bounds = array<i64: 1, 8, 32>}, {transform_indices = @transform_1, window_bounds = array<i64: 1, 8, 32>}, {transform_indices = @transform_2, window_bounds = array<i64: 1, 8, 32>}, {pipeline_mode = #tpu.pipeline_mode<synchronous>, transform_indices = @transform_3, window_bounds = array<i64: 4, 32, 8>}, {pipeline_mode = #tpu.pipeline_mode<synchronous>, transform_indices = @transform_4, window_bounds = array<i64: 4, 32, 8>}, {pipeline_mode = #tpu.pipeline_mode<synchronous>, transform_indices = @transform_5, window_bounds = array<i64: 4, 32, 8>}, {pipeline_mode = #tpu.pipeline_mode<synchronous>, transform_indices = @transform_6, window_bounds = array<i64: 4, 1, 8>}, {pipeline_mode = #tpu.pipeline_mode<synchronous>, transform_indices = @transform_7, window_bounds = array<i64: 4, 1, 8>}, {pipeline_mode = #tpu.pipeline_mode<synchronous>, transform_indices = @transform_8, window_bounds = array<i64: 4, 1, 8>}, {pipeline_mode = #tpu.pipeline_mode<synchronous>, transform_indices = @transform_9, window_bounds = array<i64: 4, 8, 32>}, {pipeline_mode = #tpu.pipeline_mode<synchronous>, transform_indices = @transform_10, window_bounds = array<i64: 1, 32>}, {transform_indices = @transform_11, window_bounds = array<i64: 1, 8, 32>}, {transform_indices = @transform_12, window_bounds = array<i64: 1, 4, 8, 8>}]} {
    %c0 = arith.constant 0 : index
    %c0_0 = arith.constant 0 : index
    %c0_1 = arith.constant 0 : index
    %0 = vector.load %arg1[%c0, %c0_0, %c0_1] : memref<1x8x32xf32, #tpu.memory_space<vmem>>, vector<1x8x32xf32>
    %1 = vector.shape_cast %0 : vector<1x8x32xf32> to vector<8x32xf32>
    %c0_2 = arith.constant 0 : index
    %c0_3 = arith.constant 0 : index
    %c0_4 = arith.constant 0 : index
    %2 = vector.load %arg2[%c0_2, %c0_3, %c0_4] : memref<1x8x32xf32, #tpu.memory_space<vmem>>, vector<1x8x32xf32>
    %3 = vector.shape_cast %2 : vector<1x8x32xf32> to vector<8x32xf32>
    %c0_5 = arith.constant 0 : index
    %c0_6 = arith.constant 0 : index
    %c0_7 = arith.constant 0 : index
    %4 = vector.load %arg3[%c0_5, %c0_6, %c0_7] : memref<1x8x32xf32, #tpu.memory_space<vmem>>, vector<1x8x32xf32>
    %5 = vector.shape_cast %4 : vector<1x8x32xf32> to vector<8x32xf32>
    %c0_8 = arith.constant 0 : index
    %c0_9 = arith.constant 0 : index
    %c0_10 = arith.constant 0 : index
    %6 = vector.load %arg4[%c0_8, %c0_9, %c0_10] : memref<4x32x8xf32, #tpu.memory_space<vmem>>, vector<1x32x8xf32>
    %7 = vector.shape_cast %6 : vector<1x32x8xf32> to vector<32x8xf32>
    %cst = arith.constant dense<0.000000e+00> : vector<8x8xf32>
    %8 = tpu.matmul %1, %7, %cst {dimension_numbers = #tpu.dot_dimension_numbers<[1], [0], [0], [1], [0, 0, 1, 1], [], []>} : vector<8x32xf32>, vector<32x8xf32>, vector<8x8xf32> -> vector<8x8xf32>
    %c0_11 = arith.constant 0 : index
    %c0_12 = arith.constant 0 : index
    %c0_13 = arith.constant 0 : index
    %9 = vector.load %arg7[%c0_11, %c0_12, %c0_13] : memref<4x1x8xf32, #tpu.memory_space<vmem>>, vector<1x1x8xf32>
    %10 = vector.shape_cast %9 : vector<1x1x8xf32> to vector<1x8xf32>
    %11 = vector.broadcast %10 : vector<1x8xf32> to vector<8x8xf32>
    %12 = arith.addf %8, %11 : vector<8x8xf32>
    %c0_14 = arith.constant 0 : index
    %c0_15 = arith.constant 0 : index
    %c0_16 = arith.constant 0 : index
    %13 = vector.load %arg5[%c0_14, %c0_15, %c0_16] : memref<4x32x8xf32, #tpu.memory_space<vmem>>, vector<1x32x8xf32>
    %14 = vector.shape_cast %13 : vector<1x32x8xf32> to vector<32x8xf32>
    %cst_17 = arith.constant dense<0.000000e+00> : vector<8x8xf32>
    %15 = tpu.matmul %3, %14, %cst_17 {dimension_numbers = #tpu.dot_dimension_numbers<[1], [0], [0], [1], [0, 0, 1, 1], [], []>} : vector<8x32xf32>, vector<32x8xf32>, vector<8x8xf32> -> vector<8x8xf32>
    %c0_18 = arith.constant 0 : index
    %c0_19 = arith.constant 0 : index
    %c0_20 = arith.constant 0 : index
    %16 = vector.load %arg8[%c0_18, %c0_19, %c0_20] : memref<4x1x8xf32, #tpu.memory_space<vmem>>, vector<1x1x8xf32>
    %17 = vector.shape_cast %16 : vector<1x1x8xf32> to vector<1x8xf32>
    %18 = vector.broadcast %17 : vector<1x8xf32> to vector<8x8xf32>
    %19 = arith.addf %15, %18 : vector<8x8xf32>
    %c0_21 = arith.constant 0 : index
    %c0_22 = arith.constant 0 : index
    %c0_23 = arith.constant 0 : index
    %20 = vector.load %arg6[%c0_21, %c0_22, %c0_23] : memref<4x32x8xf32, #tpu.memory_space<vmem>>, vector<1x32x8xf32>
    %21 = vector.shape_cast %20 : vector<1x32x8xf32> to vector<32x8xf32>
    %cst_24 = arith.constant dense<0.000000e+00> : vector<8x8xf32>
    %22 = tpu.matmul %5, %21, %cst_24 {dimension_numbers = #tpu.dot_dimension_numbers<[1], [0], [0], [1], [0, 0, 1, 1], [], []>} : vector<8x32xf32>, vector<32x8xf32>, vector<8x8xf32> -> vector<8x8xf32>
    %c0_25 = arith.constant 0 : index
    %c0_26 = arith.constant 0 : index
    %c0_27 = arith.constant 0 : index
    %23 = vector.load %arg9[%c0_25, %c0_26, %c0_27] : memref<4x1x8xf32, #tpu.memory_space<vmem>>, vector<1x1x8xf32>
    %24 = vector.shape_cast %23 : vector<1x1x8xf32> to vector<1x8xf32>
    %25 = vector.broadcast %24 : vector<1x8xf32> to vector<8x8xf32>
    %26 = arith.addf %22, %25 : vector<8x8xf32>
    %cst_28 = arith.constant dense<0.000000e+00> : vector<8x8xf32>
    %27 = tpu.matmul %12, %19, %cst_28 {dimension_numbers = #tpu.dot_dimension_numbers<[1], [1], [0], [0], [0, 0, 1, 0], [], []>} : vector<8x8xf32>, vector<8x8xf32>, vector<8x8xf32> -> vector<8x8xf32>
    %cst_29 = arith.constant dense<0xFF800000> : vector<8xf32>
    %28 = vector.multi_reduction <maximumf>, %27, %cst_29 [1] : vector<8x8xf32> to vector<8xf32>
    %29 = vector.shape_cast %28 : vector<8xf32> to vector<8x1xf32>
    %30 = vector.broadcast %29 : vector<8x1xf32> to vector<8x8xf32>
    %31 = arith.subf %27, %30 : vector<8x8xf32>
    %32 = math.exp %31 : vector<8x8xf32>
    %cst_30 = arith.constant dense<0.000000e+00> : vector<8xf32>
    %33 = vector.multi_reduction <add>, %32, %cst_30 [1] : vector<8x8xf32> to vector<8xf32>
    %34 = vector.shape_cast %33 : vector<8xf32> to vector<8x1xf32>
    %35 = tpu.reciprocal %34 {approx = true} : vector<8x1xf32> -> vector<8x1xf32>
    %36 = arith.mulf %34, %35 : vector<8x1xf32>
    %cst_31 = arith.constant 2.000000e+00 : f32
    %37 = vector.broadcast %cst_31 : f32 to vector<8x1xf32>
    %38 = arith.subf %37, %36 : vector<8x1xf32>
    %39 = arith.mulf %35, %38 : vector<8x1xf32>
    %40 = vector.broadcast %39 : vector<8x1xf32> to vector<8x8xf32>
    %41 = arith.mulf %32, %40 : vector<8x8xf32>
    %c0_32 = arith.constant 0 : index
    %c0_33 = arith.constant 0 : index
    %c0_34 = arith.constant 0 : index
    %c0_35 = arith.constant 0 : index
    %42 = vector.load %arg13[%c0_32, %c0_33, %c0_34, %c0_35] : memref<1x4x8x8xf32, #tpu.memory_space<vmem>>, vector<1x1x8x8xf32>
    %43 = vector.shape_cast %42 : vector<1x1x8x8xf32> to vector<8x8xf32>
    %44 = vector.shape_cast %41 : vector<8x8xf32> to vector<1x1x8x8xf32>
    tpu.vector_store %arg13[%c0_32, %c0_33, %c0_34, %c0_35], %44 {strides = array<i32>} : memref<1x4x8x8xf32, #tpu.memory_space<vmem>>, vector<1x1x8x8xf32>,
    %cst_36 = arith.constant dense<0.000000e+00> : vector<8x8xf32>
    %45 = tpu.matmul %41, %26, %cst_36 {dimension_numbers = #tpu.dot_dimension_numbers<[1], [0], [0], [1], [0, 0, 1, 1], [], []>} : vector<8x8xf32>, vector<8x8xf32>, vector<8x8xf32> -> vector<8x8xf32>
    %c0_37 = arith.constant 0 : index
    %c0_38 = arith.constant 0 : index
    %c0_39 = arith.constant 0 : index
    %46 = vector.load %arg10[%c0_37, %c0_38, %c0_39] : memref<4x8x32xf32, #tpu.memory_space<vmem>>, vector<1x8x32xf32>
    %47 = vector.shape_cast %46 : vector<1x8x32xf32> to vector<8x32xf32>
    %cst_40 = arith.constant dense<0.000000e+00> : vector<8x32xf32>
    %48 = tpu.matmul %45, %47, %cst_40 {dimension_numbers = #tpu.dot_dimension_numbers<[1], [0], [0], [1], [0, 0, 1, 1], [], []>} : vector<8x8xf32>, vector<8x32xf32>, vector<8x32xf32> -> vector<8x32xf32>
    %c1 = arith.constant 1 : index
    %c0_41 = arith.constant 0 : index
    %c0_42 = arith.constant 0 : index
    %49 = vector.load %arg4[%c1, %c0_41, %c0_42] : memref<4x32x8xf32, #tpu.memory_space<vmem>>, vector<1x32x8xf32>
    %50 = vector.shape_cast %49 : vector<1x32x8xf32> to vector<32x8xf32>
    %cst_43 = arith.constant dense<0.000000e+00> : vector<8x8xf32>
    %51 = tpu.matmul %1, %50, %cst_43 {dimension_numbers = #tpu.dot_dimension_numbers<[1], [0], [0], [1], [0, 0, 1, 1], [], []>} : vector<8x32xf32>, vector<32x8xf32>, vector<8x8xf32> -> vector<8x8xf32>
    %c1_44 = arith.constant 1 : index
    %c0_45 = arith.constant 0 : index
    %c0_46 = arith.constant 0 : index
    %52 = vector.load %arg7[%c1_44, %c0_45, %c0_46] : memref<4x1x8xf32, #tpu.memory_space<vmem>>, vector<1x1x8xf32>
    %53 = vector.shape_cast %52 : vector<1x1x8xf32> to vector<1x8xf32>
    %54 = vector.broadcast %53 : vector<1x8xf32> to vector<8x8xf32>
    %55 = arith.addf %51, %54 : vector<8x8xf32>
    %c1_47 = arith.constant 1 : index
    %c0_48 = arith.constant 0 : index
    %c0_49 = arith.constant 0 : index
    %56 = vector.load %arg5[%c1_47, %c0_48, %c0_49] : memref<4x32x8xf32, #tpu.memory_space<vmem>>, vector<1x32x8xf32>
    %57 = vector.shape_cast %56 : vector<1x32x8xf32> to vector<32x8xf32>
    %cst_50 = arith.constant dense<0.000000e+00> : vector<8x8xf32>
    %58 = tpu.matmul %3, %57, %cst_50 {dimension_numbers = #tpu.dot_dimension_numbers<[1], [0], [0], [1], [0, 0, 1, 1], [], []>} : vector<8x32xf32>, vector<32x8xf32>, vector<8x8xf32> -> vector<8x8xf32>
    %c1_51 = arith.constant 1 : index
    %c0_52 = arith.constant 0 : index
    %c0_53 = arith.constant 0 : index
    %59 = vector.load %arg8[%c1_51, %c0_52, %c0_53] : memref<4x1x8xf32, #tpu.memory_space<vmem>>, vector<1x1x8xf32>
    %60 = vector.shape_cast %59 : vector<1x1x8xf32> to vector<1x8xf32>
    %61 = vector.broadcast %60 : vector<1x8xf32> to vector<8x8xf32>
    %62 = arith.addf %58, %61 : vector<8x8xf32>
    %c1_54 = arith.constant 1 : index
    %c0_55 = arith.constant 0 : index
    %c0_56 = arith.constant 0 : index
    %63 = vector.load %arg6[%c1_54, %c0_55, %c0_56] : memref<4x32x8xf32, #tpu.memory_space<vmem>>, vector<1x32x8xf32>
    %64 = vector.shape_cast %63 : vector<1x32x8xf32> to vector<32x8xf32>
    %cst_57 = arith.constant dense<0.000000e+00> : vector<8x8xf32>
    %65 = tpu.matmul %5, %64, %cst_57 {dimension_numbers = #tpu.dot_dimension_numbers<[1], [0], [0], [1], [0, 0, 1, 1], [], []>} : vector<8x32xf32>, vector<32x8xf32>, vector<8x8xf32> -> vector<8x8xf32>
    %c1_58 = arith.constant 1 : index
    %c0_59 = arith.constant 0 : index
    %c0_60 = arith.constant 0 : index
    %66 = vector.load %arg9[%c1_58, %c0_59, %c0_60] : memref<4x1x8xf32, #tpu.memory_space<vmem>>, vector<1x1x8xf32>
    %67 = vector.shape_cast %66 : vector<1x1x8xf32> to vector<1x8xf32>
    %68 = vector.broadcast %67 : vector<1x8xf32> to vector<8x8xf32>
    %69 = arith.addf %65, %68 : vector<8x8xf32>
    %cst_61 = arith.constant dense<0.000000e+00> : vector<8x8xf32>
    %70 = tpu.matmul %55, %62, %cst_61 {dimension_numbers = #tpu.dot_dimension_numbers<[1], [1], [0], [0], [0, 0, 1, 0], [], []>} : vector<8x8xf32>, vector<8x8xf32>, vector<8x8xf32> -> vector<8x8xf32>
    %cst_62 = arith.constant dense<0xFF800000> : vector<8xf32>
    %71 = vector.multi_reduction <maximumf>, %70, %cst_62 [1] : vector<8x8xf32> to vector<8xf32>
    %72 = vector.shape_cast %71 : vector<8xf32> to vector<8x1xf32>
    %73 = vector.broadcast %72 : vector<8x1xf32> to vector<8x8xf32>
    %74 = arith.subf %70, %73 : vector<8x8xf32>
    %75 = math.exp %74 : vector<8x8xf32>
    %cst_63 = arith.constant dense<0.000000e+00> : vector<8xf32>
    %76 = vector.multi_reduction <add>, %75, %cst_63 [1] : vector<8x8xf32> to vector<8xf32>
    %77 = vector.shape_cast %76 : vector<8xf32> to vector<8x1xf32>
    %78 = tpu.reciprocal %77 {approx = true} : vector<8x1xf32> -> vector<8x1xf32>
    %79 = arith.mulf %77, %78 : vector<8x1xf32>
    %cst_64 = arith.constant 2.000000e+00 : f32
    %80 = vector.broadcast %cst_64 : f32 to vector<8x1xf32>
    %81 = arith.subf %80, %79 : vector<8x1xf32>
    %82 = arith.mulf %78, %81 : vector<8x1xf32>
    %83 = vector.broadcast %82 : vector<8x1xf32> to vector<8x8xf32>
    %84 = arith.mulf %75, %83 : vector<8x8xf32>
    %c0_65 = arith.constant 0 : index
    %c1_66 = arith.constant 1 : index
    %c0_67 = arith.constant 0 : index
    %c0_68 = arith.constant 0 : index
    %85 = vector.load %arg13[%c0_65, %c1_66, %c0_67, %c0_68] : memref<1x4x8x8xf32, #tpu.memory_space<vmem>>, vector<1x1x8x8xf32>
    %86 = vector.shape_cast %85 : vector<1x1x8x8xf32> to vector<8x8xf32>
    %87 = vector.shape_cast %84 : vector<8x8xf32> to vector<1x1x8x8xf32>
    tpu.vector_store %arg13[%c0_65, %c1_66, %c0_67, %c0_68], %87 {strides = array<i32>} : memref<1x4x8x8xf32, #tpu.memory_space<vmem>>, vector<1x1x8x8xf32>,
    %cst_69 = arith.constant dense<0.000000e+00> : vector<8x8xf32>
    %88 = tpu.matmul %84, %69, %cst_69 {dimension_numbers = #tpu.dot_dimension_numbers<[1], [0], [0], [1], [0, 0, 1, 1], [], []>} : vector<8x8xf32>, vector<8x8xf32>, vector<8x8xf32> -> vector<8x8xf32>
    %c1_70 = arith.constant 1 : index
    %c0_71 = arith.constant 0 : index
    %c0_72 = arith.constant 0 : index
    %89 = vector.load %arg10[%c1_70, %c0_71, %c0_72] : memref<4x8x32xf32, #tpu.memory_space<vmem>>, vector<1x8x32xf32>
    %90 = vector.shape_cast %89 : vector<1x8x32xf32> to vector<8x32xf32>
    %cst_73 = arith.constant dense<0.000000e+00> : vector<8x32xf32>
    %91 = tpu.matmul %88, %90, %cst_73 {dimension_numbers = #tpu.dot_dimension_numbers<[1], [0], [0], [1], [0, 0, 1, 1], [], []>} : vector<8x8xf32>, vector<8x32xf32>, vector<8x32xf32> -> vector<8x32xf32>
    %92 = arith.addf %48, %91 : vector<8x32xf32>
    %c2 = arith.constant 2 : index
    %c0_74 = arith.constant 0 : index
    %c0_75 = arith.constant 0 : index
    %93 = vector.load %arg4[%c2, %c0_74, %c0_75] : memref<4x32x8xf32, #tpu.memory_space<vmem>>, vector<1x32x8xf32>
    %94 = vector.shape_cast %93 : vector<1x32x8xf32> to vector<32x8xf32>
    %cst_76 = arith.constant dense<0.000000e+00> : vector<8x8xf32>
    %95 = tpu.matmul %1, %94, %cst_76 {dimension_numbers = #tpu.dot_dimension_numbers<[1], [0], [0], [1], [0, 0, 1, 1], [], []>} : vector<8x32xf32>, vector<32x8xf32>, vector<8x8xf32> -> vector<8x8xf32>
    %c2_77 = arith.constant 2 : index
    %c0_78 = arith.constant 0 : index
    %c0_79 = arith.constant 0 : index
    %96 = vector.load %arg7[%c2_77, %c0_78, %c0_79] : memref<4x1x8xf32, #tpu.memory_space<vmem>>, vector<1x1x8xf32>
    %97 = vector.shape_cast %96 : vector<1x1x8xf32> to vector<1x8xf32>
    %98 = vector.broadcast %97 : vector<1x8xf32> to vector<8x8xf32>
    %99 = arith.addf %95, %98 : vector<8x8xf32>
    %c2_80 = arith.constant 2 : index
    %c0_81 = arith.constant 0 : index
    %c0_82 = arith.constant 0 : index
    %100 = vector.load %arg5[%c2_80, %c0_81, %c0_82] : memref<4x32x8xf32, #tpu.memory_space<vmem>>, vector<1x32x8xf32>
    %101 = vector.shape_cast %100 : vector<1x32x8xf32> to vector<32x8xf32>
    %cst_83 = arith.constant dense<0.000000e+00> : vector<8x8xf32>
    %102 = tpu.matmul %3, %101, %cst_83 {dimension_numbers = #tpu.dot_dimension_numbers<[1], [0], [0], [1], [0, 0, 1, 1], [], []>} : vector<8x32xf32>, vector<32x8xf32>, vector<8x8xf32> -> vector<8x8xf32>
    %c2_84 = arith.constant 2 : index
    %c0_85 = arith.constant 0 : index
    %c0_86 = arith.constant 0 : index
    %103 = vector.load %arg8[%c2_84, %c0_85, %c0_86] : memref<4x1x8xf32, #tpu.memory_space<vmem>>, vector<1x1x8xf32>
    %104 = vector.shape_cast %103 : vector<1x1x8xf32> to vector<1x8xf32>
    %105 = vector.broadcast %104 : vector<1x8xf32> to vector<8x8xf32>
    %106 = arith.addf %102, %105 : vector<8x8xf32>
    %c2_87 = arith.constant 2 : index
    %c0_88 = arith.constant 0 : index
    %c0_89 = arith.constant 0 : index
    %107 = vector.load %arg6[%c2_87, %c0_88, %c0_89] : memref<4x32x8xf32, #tpu.memory_space<vmem>>, vector<1x32x8xf32>
    %108 = vector.shape_cast %107 : vector<1x32x8xf32> to vector<32x8xf32>
    %cst_90 = arith.constant dense<0.000000e+00> : vector<8x8xf32>
    %109 = tpu.matmul %5, %108, %cst_90 {dimension_numbers = #tpu.dot_dimension_numbers<[1], [0], [0], [1], [0, 0, 1, 1], [], []>} : vector<8x32xf32>, vector<32x8xf32>, vector<8x8xf32> -> vector<8x8xf32>
    %c2_91 = arith.constant 2 : index
    %c0_92 = arith.constant 0 : index
    %c0_93 = arith.constant 0 : index
    %110 = vector.load %arg9[%c2_91, %c0_92, %c0_93] : memref<4x1x8xf32, #tpu.memory_space<vmem>>, vector<1x1x8xf32>
    %111 = vector.shape_cast %110 : vector<1x1x8xf32> to vector<1x8xf32>
    %112 = vector.broadcast %111 : vector<1x8xf32> to vector<8x8xf32>
    %113 = arith.addf %109, %112 : vector<8x8xf32>
    %cst_94 = arith.constant dense<0.000000e+00> : vector<8x8xf32>
    %114 = tpu.matmul %99, %106, %cst_94 {dimension_numbers = #tpu.dot_dimension_numbers<[1], [1], [0], [0], [0, 0, 1, 0], [], []>} : vector<8x8xf32>, vector<8x8xf32>, vector<8x8xf32> -> vector<8x8xf32>
    %cst_95 = arith.constant dense<0xFF800000> : vector<8xf32>
    %115 = vector.multi_reduction <maximumf>, %114, %cst_95 [1] : vector<8x8xf32> to vector<8xf32>
    %116 = vector.shape_cast %115 : vector<8xf32> to vector<8x1xf32>
    %117 = vector.broadcast %116 : vector<8x1xf32> to vector<8x8xf32>
    %118 = arith.subf %114, %117 : vector<8x8xf32>
    %119 = math.exp %118 : vector<8x8xf32>
    %cst_96 = arith.constant dense<0.000000e+00> : vector<8xf32>
    %120 = vector.multi_reduction <add>, %119, %cst_96 [1] : vector<8x8xf32> to vector<8xf32>
    %121 = vector.shape_cast %120 : vector<8xf32> to vector<8x1xf32>
    %122 = tpu.reciprocal %121 {approx = true} : vector<8x1xf32> -> vector<8x1xf32>
    %123 = arith.mulf %121, %122 : vector<8x1xf32>
    %cst_97 = arith.constant 2.000000e+00 : f32
    %124 = vector.broadcast %cst_97 : f32 to vector<8x1xf32>
    %125 = arith.subf %124, %123 : vector<8x1xf32>
    %126 = arith.mulf %122, %125 : vector<8x1xf32>
    %127 = vector.broadcast %126 : vector<8x1xf32> to vector<8x8xf32>
    %128 = arith.mulf %119, %127 : vector<8x8xf32>
    %c0_98 = arith.constant 0 : index
    %c2_99 = arith.constant 2 : index
    %c0_100 = arith.constant 0 : index
    %c0_101 = arith.constant 0 : index
    %129 = vector.load %arg13[%c0_98, %c2_99, %c0_100, %c0_101] : memref<1x4x8x8xf32, #tpu.memory_space<vmem>>, vector<1x1x8x8xf32>
    %130 = vector.shape_cast %129 : vector<1x1x8x8xf32> to vector<8x8xf32>
    %131 = vector.shape_cast %128 : vector<8x8xf32> to vector<1x1x8x8xf32>
    tpu.vector_store %arg13[%c0_98, %c2_99, %c0_100, %c0_101], %131 {strides = array<i32>} : memref<1x4x8x8xf32, #tpu.memory_space<vmem>>, vector<1x1x8x8xf32>,
    %cst_102 = arith.constant dense<0.000000e+00> : vector<8x8xf32>
    %132 = tpu.matmul %128, %113, %cst_102 {dimension_numbers = #tpu.dot_dimension_numbers<[1], [0], [0], [1], [0, 0, 1, 1], [], []>} : vector<8x8xf32>, vector<8x8xf32>, vector<8x8xf32> -> vector<8x8xf32>
    %c2_103 = arith.constant 2 : index
    %c0_104 = arith.constant 0 : index
    %c0_105 = arith.constant 0 : index
    %133 = vector.load %arg10[%c2_103, %c0_104, %c0_105] : memref<4x8x32xf32, #tpu.memory_space<vmem>>, vector<1x8x32xf32>
    %134 = vector.shape_cast %133 : vector<1x8x32xf32> to vector<8x32xf32>
    %cst_106 = arith.constant dense<0.000000e+00> : vector<8x32xf32>
    %135 = tpu.matmul %132, %134, %cst_106 {dimension_numbers = #tpu.dot_dimension_numbers<[1], [0], [0], [1], [0, 0, 1, 1], [], []>} : vector<8x8xf32>, vector<8x32xf32>, vector<8x32xf32> -> vector<8x32xf32>
    %136 = arith.addf %92, %135 : vector<8x32xf32>
    %c3 = arith.constant 3 : index
    %c0_107 = arith.constant 0 : index
    %c0_108 = arith.constant 0 : index
    %137 = vector.load %arg4[%c3, %c0_107, %c0_108] : memref<4x32x8xf32, #tpu.memory_space<vmem>>, vector<1x32x8xf32>
    %138 = vector.shape_cast %137 : vector<1x32x8xf32> to vector<32x8xf32>
    %cst_109 = arith.constant dense<0.000000e+00> : vector<8x8xf32>
    %139 = tpu.matmul %1, %138, %cst_109 {dimension_numbers = #tpu.dot_dimension_numbers<[1], [0], [0], [1], [0, 0, 1, 1], [], []>} : vector<8x32xf32>, vector<32x8xf32>, vector<8x8xf32> -> vector<8x8xf32>
    %c3_110 = arith.constant 3 : index
    %c0_111 = arith.constant 0 : index
    %c0_112 = arith.constant 0 : index
    %140 = vector.load %arg7[%c3_110, %c0_111, %c0_112] : memref<4x1x8xf32, #tpu.memory_space<vmem>>, vector<1x1x8xf32>
    %141 = vector.shape_cast %140 : vector<1x1x8xf32> to vector<1x8xf32>
    %142 = vector.broadcast %141 : vector<1x8xf32> to vector<8x8xf32>
    %143 = arith.addf %139, %142 : vector<8x8xf32>
    %c3_113 = arith.constant 3 : index
    %c0_114 = arith.constant 0 : index
    %c0_115 = arith.constant 0 : index
    %144 = vector.load %arg5[%c3_113, %c0_114, %c0_115] : memref<4x32x8xf32, #tpu.memory_space<vmem>>, vector<1x32x8xf32>
    %145 = vector.shape_cast %144 : vector<1x32x8xf32> to vector<32x8xf32>
    %cst_116 = arith.constant dense<0.000000e+00> : vector<8x8xf32>
    %146 = tpu.matmul %3, %145, %cst_116 {dimension_numbers = #tpu.dot_dimension_numbers<[1], [0], [0], [1], [0, 0, 1, 1], [], []>} : vector<8x32xf32>, vector<32x8xf32>, vector<8x8xf32> -> vector<8x8xf32>
    %c3_117 = arith.constant 3 : index
    %c0_118 = arith.constant 0 : index
    %c0_119 = arith.constant 0 : index
    %147 = vector.load %arg8[%c3_117, %c0_118, %c0_119] : memref<4x1x8xf32, #tpu.memory_space<vmem>>, vector<1x1x8xf32>
    %148 = vector.shape_cast %147 : vector<1x1x8xf32> to vector<1x8xf32>
    %149 = vector.broadcast %148 : vector<1x8xf32> to vector<8x8xf32>
    %150 = arith.addf %146, %149 : vector<8x8xf32>
    %c3_120 = arith.constant 3 : index
    %c0_121 = arith.constant 0 : index
    %c0_122 = arith.constant 0 : index
    %151 = vector.load %arg6[%c3_120, %c0_121, %c0_122] : memref<4x32x8xf32, #tpu.memory_space<vmem>>, vector<1x32x8xf32>
    %152 = vector.shape_cast %151 : vector<1x32x8xf32> to vector<32x8xf32>
    %cst_123 = arith.constant dense<0.000000e+00> : vector<8x8xf32>
    %153 = tpu.matmul %5, %152, %cst_123 {dimension_numbers = #tpu.dot_dimension_numbers<[1], [0], [0], [1], [0, 0, 1, 1], [], []>} : vector<8x32xf32>, vector<32x8xf32>, vector<8x8xf32> -> vector<8x8xf32>
    %c3_124 = arith.constant 3 : index
    %c0_125 = arith.constant 0 : index
    %c0_126 = arith.constant 0 : index
    %154 = vector.load %arg9[%c3_124, %c0_125, %c0_126] : memref<4x1x8xf32, #tpu.memory_space<vmem>>, vector<1x1x8xf32>
    %155 = vector.shape_cast %154 : vector<1x1x8xf32> to vector<1x8xf32>
    %156 = vector.broadcast %155 : vector<1x8xf32> to vector<8x8xf32>
    %157 = arith.addf %153, %156 : vector<8x8xf32>
    %cst_127 = arith.constant dense<0.000000e+00> : vector<8x8xf32>
    %158 = tpu.matmul %143, %150, %cst_127 {dimension_numbers = #tpu.dot_dimension_numbers<[1], [1], [0], [0], [0, 0, 1, 0], [], []>} : vector<8x8xf32>, vector<8x8xf32>, vector<8x8xf32> -> vector<8x8xf32>
    %cst_128 = arith.constant dense<0xFF800000> : vector<8xf32>
    %159 = vector.multi_reduction <maximumf>, %158, %cst_128 [1] : vector<8x8xf32> to vector<8xf32>
    %160 = vector.shape_cast %159 : vector<8xf32> to vector<8x1xf32>
    %161 = vector.broadcast %160 : vector<8x1xf32> to vector<8x8xf32>
    %162 = arith.subf %158, %161 : vector<8x8xf32>
    %163 = math.exp %162 : vector<8x8xf32>
    %cst_129 = arith.constant dense<0.000000e+00> : vector<8xf32>
    %164 = vector.multi_reduction <add>, %163, %cst_129 [1] : vector<8x8xf32> to vector<8xf32>
    %165 = vector.shape_cast %164 : vector<8xf32> to vector<8x1xf32>
    %166 = tpu.reciprocal %165 {approx = true} : vector<8x1xf32> -> vector<8x1xf32>
    %167 = arith.mulf %165, %166 : vector<8x1xf32>
    %cst_130 = arith.constant 2.000000e+00 : f32
    %168 = vector.broadcast %cst_130 : f32 to vector<8x1xf32>
    %169 = arith.subf %168, %167 : vector<8x1xf32>
    %170 = arith.mulf %166, %169 : vector<8x1xf32>
    %171 = vector.broadcast %170 : vector<8x1xf32> to vector<8x8xf32>
    %172 = arith.mulf %163, %171 : vector<8x8xf32>
    %c0_131 = arith.constant 0 : index
    %c3_132 = arith.constant 3 : index
    %c0_133 = arith.constant 0 : index
    %c0_134 = arith.constant 0 : index
    %173 = vector.load %arg13[%c0_131, %c3_132, %c0_133, %c0_134] : memref<1x4x8x8xf32, #tpu.memory_space<vmem>>, vector<1x1x8x8xf32>
    %174 = vector.shape_cast %173 : vector<1x1x8x8xf32> to vector<8x8xf32>
    %175 = vector.shape_cast %172 : vector<8x8xf32> to vector<1x1x8x8xf32>
    tpu.vector_store %arg13[%c0_131, %c3_132, %c0_133, %c0_134], %175 {strides = array<i32>} : memref<1x4x8x8xf32, #tpu.memory_space<vmem>>, vector<1x1x8x8xf32>,
    %cst_135 = arith.constant dense<0.000000e+00> : vector<8x8xf32>
    %176 = tpu.matmul %172, %157, %cst_135 {dimension_numbers = #tpu.dot_dimension_numbers<[1], [0], [0], [1], [0, 0, 1, 1], [], []>} : vector<8x8xf32>, vector<8x8xf32>, vector<8x8xf32> -> vector<8x8xf32>
    %c3_136 = arith.constant 3 : index
    %c0_137 = arith.constant 0 : index
    %c0_138 = arith.constant 0 : index
    %177 = vector.load %arg10[%c3_136, %c0_137, %c0_138] : memref<4x8x32xf32, #tpu.memory_space<vmem>>, vector<1x8x32xf32>
    %178 = vector.shape_cast %177 : vector<1x8x32xf32> to vector<8x32xf32>
    %cst_139 = arith.constant dense<0.000000e+00> : vector<8x32xf32>
    %179 = tpu.matmul %176, %178, %cst_139 {dimension_numbers = #tpu.dot_dimension_numbers<[1], [0], [0], [1], [0, 0, 1, 1], [], []>} : vector<8x8xf32>, vector<8x32xf32>, vector<8x32xf32> -> vector<8x32xf32>
    %180 = arith.addf %136, %179 : vector<8x32xf32>
    %c0_140 = arith.constant 0 : index
    %c0_141 = arith.constant 0 : index
    %181 = vector.load %arg11[%c0_140, %c0_141] : memref<1x32xf32, #tpu.memory_space<vmem>>, vector<1x32xf32>
    %182 = vector.broadcast %181 : vector<1x32xf32> to vector<8x32xf32>
    %183 = arith.addf %180, %182 : vector<8x32xf32>
    %c0_142 = arith.constant 0 : index
    %c0_143 = arith.constant 0 : index
    %c0_144 = arith.constant 0 : index
    %184 = vector.load %arg12[%c0_142, %c0_143, %c0_144] : memref<1x8x32xf32, #tpu.memory_space<vmem>>, vector<1x8x32xf32>
    %185 = vector.shape_cast %184 : vector<1x8x32xf32> to vector<8x32xf32>
    %186 = vector.shape_cast %183 : vector<8x32xf32> to vector<1x8x32xf32>
    tpu.vector_store %arg12[%c0_142, %c0_143, %c0_144], %186 {strides = array<i32>} : memref<1x8x32xf32, #tpu.memory_space<vmem>>, vector<1x8x32xf32>,
    return
  }
  func.func @transform_0(%arg0: i32) -> (i32, i32, i32) {
    %c0_i32 = arith.constant 0 : i32
    %c0_i32_0 = arith.constant 0 : i32
    %c0_i32_1 = arith.constant 0 : i32
    return %arg0, %c0_i32, %c0_i32_0 : i32, i32, i32
  }
  func.func @transform_1(%arg0: i32) -> (i32, i32, i32) {
    %c0_i32 = arith.constant 0 : i32
    %c0_i32_0 = arith.constant 0 : i32
    %c0_i32_1 = arith.constant 0 : i32
    return %arg0, %c0_i32, %c0_i32_0 : i32, i32, i32
  }
  func.func @transform_2(%arg0: i32) -> (i32, i32, i32) {
    %c0_i32 = arith.constant 0 : i32
    %c0_i32_0 = arith.constant 0 : i32
    %c0_i32_1 = arith.constant 0 : i32
    return %arg0, %c0_i32, %c0_i32_0 : i32, i32, i32
  }
  func.func @transform_3(%arg0: i32) -> (i32, i32, i32) {
    %c0_i32 = arith.constant 0 : i32
    %c0_i32_0 = arith.constant 0 : i32
    %c0_i32_1 = arith.constant 0 : i32
    %c0_i32_2 = arith.constant 0 : i32
    return %c0_i32, %c0_i32_0, %c0_i32_1 : i32, i32, i32
  }
  func.func @transform_4(%arg0: i32) -> (i32, i32, i32) {
    %c0_i32 = arith.constant 0 : i32
    %c0_i32_0 = arith.constant 0 : i32
    %c0_i32_1 = arith.constant 0 : i32
    %c0_i32_2 = arith.constant 0 : i32
    return %c0_i32, %c0_i32_0, %c0_i32_1 : i32, i32, i32
  }
  func.func @transform_5(%arg0: i32) -> (i32, i32, i32) {
    %c0_i32 = arith.constant 0 : i32
    %c0_i32_0 = arith.constant 0 : i32
    %c0_i32_1 = arith.constant 0 : i32
    %c0_i32_2 = arith.constant 0 : i32
    return %c0_i32, %c0_i32_0, %c0_i32_1 : i32, i32, i32
  }
  func.func @transform_6(%arg0: i32) -> (i32, i32, i32) {
    %c0_i32 = arith.constant 0 : i32
    %c0_i32_0 = arith.constant 0 : i32
    %c0_i32_1 = arith.constant 0 : i32
    %c0_i32_2 = arith.constant 0 : i32
    return %c0_i32, %c0_i32_0, %c0_i32_1 : i32, i32, i32
  }
  func.func @transform_7(%arg0: i32) -> (i32, i32, i32) {
    %c0_i32 = arith.constant 0 : i32
    %c0_i32_0 = arith.constant 0 : i32
    %c0_i32_1 = arith.constant 0 : i32
    %c0_i32_2 = arith.constant 0 : i32
    return %c0_i32, %c0_i32_0, %c0_i32_1 : i32, i32, i32
  }
  func.func @transform_8(%arg0: i32) -> (i32, i32, i32) {
    %c0_i32 = arith.constant 0 : i32
    %c0_i32_0 = arith.constant 0 : i32
    %c0_i32_1 = arith.constant 0 : i32
    %c0_i32_2 = arith.constant 0 : i32
    return %c0_i32, %c0_i32_0, %c0_i32_1 : i32, i32, i32
  }
  func.func @transform_9(%arg0: i32) -> (i32, i32, i32) {
    %c0_i32 = arith.constant 0 : i32
    %c0_i32_0 = arith.constant 0 : i32
    %c0_i32_1 = arith.constant 0 : i32
    %c0_i32_2 = arith.constant 0 : i32
    return %c0_i32, %c0_i32_0, %c0_i32_1 : i32, i32, i32
  }
  func.func @transform_10(%arg0: i32) -> (i32, i32) {
    %c0_i32 = arith.constant 0 : i32
    %c0_i32_0 = arith.constant 0 : i32
    %c0_i32_1 = arith.constant 0 : i32
    return %c0_i32, %c0_i32_0 : i32, i32
  }
  func.func @transform_11(%arg0: i32) -> (i32, i32, i32) {
    %c0_i32 = arith.constant 0 : i32
    %c0_i32_0 = arith.constant 0 : i32
    %c0_i32_1 = arith.constant 0 : i32
    return %arg0, %c0_i32, %c0_i32_0 : i32, i32, i32
  }
  func.func @transform_12(%arg0: i32) -> (i32, i32, i32, i32) {
    %c0_i32 = arith.constant 0 : i32
    %c0_i32_0 = arith.constant 0 : i32
    %c0_i32_1 = arith.constant 0 : i32
    %c0_i32_2 = arith.constant 0 : i32
    return %arg0, %c0_i32, %c0_i32_0, %c0_i32_1 : i32, i32, i32, i32
  }
}

</mosaic_0001>

<llo_original>
// kernel: multi_head_attention.1
$region0: #{multi_head_attention.1}
  #allocation0 [shape = 'u32[]', space=smem, size = 0x4, offset = 0x4, fixed_abs, tag = 'smem constant byte address 0x4 - core index']
  #allocation1 [shape = 'u32[144,128]{1,0:T(1,128)}', space=vmem, size = 0x12000, scoped, tag = 'internal scratch']
  %s0 = inlined_call_operand.vmem [shape: f32[2,8,32], index: 0, kind: input, shape index: {}]
  %s1 = inlined_call_operand.vmem [shape: f32[2,8,32], index: 1, kind: input, shape index: {}]
  %s2 = inlined_call_operand.vmem [shape: f32[2,8,32], index: 2, kind: input, shape index: {}]
  %s3 = inlined_call_operand.vmem [shape: f32[4,32,8], index: 3, kind: input, shape index: {}]
  %s4 = inlined_call_operand.vmem [shape: f32[4,32,8], index: 4, kind: input, shape index: {}]
  %s5 = inlined_call_operand.vmem [shape: f32[4,32,8], index: 5, kind: input, shape index: {}]
  %s6 = inlined_call_operand.vmem [shape: f32[4,1,8], index: 6, kind: input, shape index: {}]
  %s7 = inlined_call_operand.vmem [shape: f32[4,1,8], index: 7, kind: input, shape index: {}]
  %s8 = inlined_call_operand.vmem [shape: f32[4,1,8], index: 8, kind: input, shape index: {}]
  %s9 = inlined_call_operand.vmem [shape: f32[4,8,32], index: 9, kind: input, shape index: {}]
  %s10 = inlined_call_operand.vmem [shape: f32[1,32], index: 10, kind: input, shape index: {}]
  %s11 = inlined_call_operand.hbm [shape: f32[2,8,32], index: 11, kind: output, shape index: {0}]
  %s12 = inlined_call_operand.hbm [shape: f32[2,4,8,8], index: 12, kind: output, shape index: {1}]
  %13 = xla_tuple %s11, %s12
  %s14 = sld [smem:[#allocation0]]
  $region85: #{multi_head_attention.1} parent=0
    _
  %s16 = ssub.s32 1, %s14
  %s17 = scalar_select 0, %s16, %s14
  $region1: #{multi_head_attention.1} parent=0
    #allocation2 [shape = 'u8[8192]{0}', space=vmem, size = 0x2000, scoped, tag = 'output window, operand 0']
    #allocation3 [shape = 's32[2]{0}', space=sflag, size = 0x8, scoped, tag = 'scoped memory for multi_head_attention.1']
    #allocation4 [shape = 'u8[32768]{0}', space=vmem, size = 0x8000, scoped, tag = 'output window, operand 1']
    #allocation5 [shape = 's32[2]{0}', space=sflag, size = 0x8, scoped, tag = 'scoped memory for multi_head_attention.1']
    %18 = vsyncpa [#allocation3], 0
    %s19 = scalar_lea.sflag [#allocation3], 1
    %20 = vsyncpa %s19, 0
    %21 = vsyncpa [#allocation5], 0
    %s22 = scalar_lea.sflag [#allocation5], 1
    %23 = vsyncpa %s22, 0
    loop: start=0, step=1, limit=4
    $region2: #{multi_head_attention.1} parent=1 // loop_pre_header
      _
    $region3: #{multi_head_attention.1} parent=1 // loop_header
      %s25 = sphi 0, %s29
      %p26 = scmp.ge.s32.totalorder %s25, 4
      %s35 = sphi 0, %s37
      %s38 = sphi 0, %s35
      %s39 = sphi 0, %s38
      %s55 = sphi 0, %s39
      %s61 = sphi 0, %s63
      %s64 = sphi 0, %s61
      %s65 = sphi 0, %s64
      %s81 = sphi 0, %s65
      %s87 = sphi 0, %s89
      %s90 = sphi 0, %s87
      %s91 = sphi 0, %s90
      %s107 = sphi 0, %s91
      %s111 = sphi 0, %s111
      %s113 = sphi 0, %s111
      %s114 = sphi 0, %s113
      %s128 = sphi 0, %s114
      %s132 = sphi 0, %s132
      %s134 = sphi 0, %s132
      %s135 = sphi 0, %s134
      %s149 = sphi 0, %s135
      %s153 = sphi 0, %s153
      %s155 = sphi 0, %s153
      %s156 = sphi 0, %s155
      %s170 = sphi 0, %s156
      %s174 = sphi 0, %s174
      %s176 = sphi 0, %s174
      %s177 = sphi 0, %s176
      %s191 = sphi 0, %s177
      %s195 = sphi 0, %s195
      %s197 = sphi 0, %s195
      %s198 = sphi 0, %s197
      %s212 = sphi 0, %s198
      %s216 = sphi 0, %s216
      %s218 = sphi 0, %s216
      %s219 = sphi 0, %s218
      %s233 = sphi 0, %s219
      %s237 = sphi 0, %s237
      %s239 = sphi 0, %s237
      %s240 = sphi 0, %s239
      %s254 = sphi 0, %s240
      %s258 = sphi 0, %s258
      %s260 = sphi 0, %s258
      %s261 = sphi 0, %s260
      %s275 = sphi 0, %s261
      %s281 = sphi 0, %s283
      %s284 = sphi 0, %s281
      %s285 = sphi 0, %s284
      %s301 = sphi 0, %s285
      %s307 = sphi 0, %s309
      %s310 = sphi 0, %s307
      %s311 = sphi 0, %s310
      %s327 = sphi 0, %s311
    $region4: #{multi_head_attention.1} parent=1 // loop_header_branch
      %28 = sbr.rel (%p26) target = $region8
    $region5: #{multi_head_attention.1} parent=1 // loop_body
      %s30 = ssub.s32 %s25, 1
      %s31 = ssub.s32 %s25, 2
      %s32 = sadd.s32 %s25, 1
      %s33 = ssub.s32 %s25, %s32
      %p34 = scmp.eq.s32.totalorder %s33, 0
      %s36 = sadd.s32 %s35, 1
      %s37 = scalar_select %p34, %s35, %s36
      %p40 = pneg %p34
      %p41 = scmp.eq.s32.totalorder %s25, 1
      %p42 = por %p40, %p41
      %p43 = scmp.ne.s32.totalorder %s35, %s38
      %p44 = scmp.eq.s32.totalorder %s25, 0
      %p45 = por %p43, %p44
      %p46 = scmp.ne.s32.totalorder %s35, %s38
      %p47 = scmp.eq.s32.totalorder %s30, 1
      %p48 = por %p46, %p47
      %p49 = scmp.ne.s32.totalorder %s38, %s39
      %p50 = scmp.eq.s32.totalorder %s30, 0
      %p51 = por %p49, %p50
      %p52 = scmp.ne.s32.totalorder %s38, %s39
      %p53 = scmp.eq.s32.totalorder %s31, 1
      %p54 = por %p52, %p53
      %p56 = scmp.ne.s32.totalorder %s39, %s55
      %p57 = scmp.eq.s32.totalorder %s31, 0
      %p58 = por %p56, %p57
      %s59 = ssub.s32 %s25, %s32
      %p60 = scmp.eq.s32.totalorder %s59, 0
      %s62 = sadd.s32 %s61, 1
      %s63 = scalar_select %p60, %s61, %s62
      %p66 = pneg %p60
      %p67 = scmp.eq.s32.totalorder %s25, 1
      %p68 = por %p66, %p67
      %p69 = scmp.ne.s32.totalorder %s61, %s64
      %p70 = scmp.eq.s32.totalorder %s25, 0
      %p71 = por %p69, %p70
      %p72 = scmp.ne.s32.totalorder %s61, %s64
      %p73 = scmp.eq.s32.totalorder %s30, 1
      %p74 = por %p72, %p73
      %p75 = scmp.ne.s32.totalorder %s64, %s65
      %p76 = scmp.eq.s32.totalorder %s30, 0
      %p77 = por %p75, %p76
      %p78 = scmp.ne.s32.totalorder %s64, %s65
      %p79 = scmp.eq.s32.totalorder %s31, 1
      %p80 = por %p78, %p79
      %p82 = scmp.ne.s32.totalorder %s65, %s81
      %p83 = scmp.eq.s32.totalorder %s31, 0
      %p84 = por %p82, %p83
      %s85 = ssub.s32 %s25, %s32
      %p86 = scmp.eq.s32.totalorder %s85, 0
      %s88 = sadd.s32 %s87, 1
      %s89 = scalar_select %p86, %s87, %s88
      %p92 = pneg %p86
      %p93 = scmp.eq.s32.totalorder %s25, 1
      %p94 = por %p92, %p93
      %p95 = scmp.ne.s32.totalorder %s87, %s90
      %p96 = scmp.eq.s32.totalorder %s25, 0
      %p97 = por %p95, %p96
      %p98 = scmp.ne.s32.totalorder %s87, %s90
      %p99 = scmp.eq.s32.totalorder %s30, 1
      %p100 = por %p98, %p99
      %p101 = scmp.ne.s32.totalorder %s90, %s91
      %p102 = scmp.eq.s32.totalorder %s30, 0
      %p103 = por %p101, %p102
      %p104 = scmp.ne.s32.totalorder %s90, %s91
      %p105 = scmp.eq.s32.totalorder %s31, 1
      %p106 = por %p104, %p105
      %p108 = scmp.ne.s32.totalorder %s91, %s107
      %p109 = scmp.eq.s32.totalorder %s31, 0
      %p110 = por %p108, %p109
      %s112 = sadd.s32 %s111, 1
      %p115 = scmp.eq.s32.totalorder %s25, 1
      %p116 = scmp.ne.s32.totalorder %s111, %s113
      %p117 = scmp.eq.s32.totalorder %s25, 0
      %p118 = por %p116, %p117
      %p119 = scmp.ne.s32.totalorder %s111, %s113
      %p120 = scmp.eq.s32.totalorder %s30, 1
      %p121 = por %p119, %p120
      %p122 = scmp.ne.s32.totalorder %s113, %s114
      %p123 = scmp.eq.s32.totalorder %s30, 0
      %p124 = por %p122, %p123
      %p125 = scmp.ne.s32.totalorder %s113, %s114
      %p126 = scmp.eq.s32.totalorder %s31, 1
      %p127 = por %p125, %p126
      %p129 = scmp.ne.s32.totalorder %s114, %s128
      %p130 = scmp.eq.s32.totalorder %s31, 0
      %p131 = por %p129, %p130
      %s133 = sadd.s32 %s132, 1
      %p136 = scmp.eq.s32.totalorder %s25, 1
      %p137 = scmp.ne.s32.totalorder %s132, %s134
      %p138 = scmp.eq.s32.totalorder %s25, 0
      %p139 = por %p137, %p138
      %p140 = scmp.ne.s32.totalorder %s132, %s134
      %p141 = scmp.eq.s32.totalorder %s30, 1
      %p142 = por %p140, %p141
      %p143 = scmp.ne.s32.totalorder %s134, %s135
      %p144 = scmp.eq.s32.totalorder %s30, 0
      %p145 = por %p143, %p144
      %p146 = scmp.ne.s32.totalorder %s134, %s135
      %p147 = scmp.eq.s32.totalorder %s31, 1
      %p148 = por %p146, %p147
      %p150 = scmp.ne.s32.totalorder %s135, %s149
      %p151 = scmp.eq.s32.totalorder %s31, 0
      %p152 = por %p150, %p151
      %s154 = sadd.s32 %s153, 1
      %p157 = scmp.eq.s32.totalorder %s25, 1
      %p158 = scmp.ne.s32.totalorder %s153, %s155
      %p159 = scmp.eq.s32.totalorder %s25, 0
      %p160 = por %p158, %p159
      %p161 = scmp.ne.s32.totalorder %s153, %s155
      %p162 = scmp.eq.s32.totalorder %s30, 1
      %p163 = por %p161, %p162
      %p164 = scmp.ne.s32.totalorder %s155, %s156
      %p165 = scmp.eq.s32.totalorder %s30, 0
      %p166 = por %p164, %p165
      %p167 = scmp.ne.s32.totalorder %s155, %s156
      %p168 = scmp.eq.s32.totalorder %s31, 1
      %p169 = por %p167, %p168
      %p171 = scmp.ne.s32.totalorder %s156, %s170
      %p172 = scmp.eq.s32.totalorder %s31, 0
      %p173 = por %p171, %p172
      %s175 = sadd.s32 %s174, 1
      %p178 = scmp.eq.s32.totalorder %s25, 1
      %p179 = scmp.ne.s32.totalorder %s174, %s176
      %p180 = scmp.eq.s32.totalorder %s25, 0
      %p181 = por %p179, %p180
      %p182 = scmp.ne.s32.totalorder %s174, %s176
      %p183 = scmp.eq.s32.totalorder %s30, 1
      %p184 = por %p182, %p183
      %p185 = scmp.ne.s32.totalorder %s176, %s177
      %p186 = scmp.eq.s32.totalorder %s30, 0
      %p187 = por %p185, %p186
      %p188 = scmp.ne.s32.totalorder %s176, %s177
      %p189 = scmp.eq.s32.totalorder %s31, 1
      %p190 = por %p188, %p189
      %p192 = scmp.ne.s32.totalorder %s177, %s191
      %p193 = scmp.eq.s32.totalorder %s31, 0
      %p194 = por %p192, %p193
      %s196 = sadd.s32 %s195, 1
      %p199 = scmp.eq.s32.totalorder %s25, 1
      %p200 = scmp.ne.s32.totalorder %s195, %s197
      %p201 = scmp.eq.s32.totalorder %s25, 0
      %p202 = por %p200, %p201
      %p203 = scmp.ne.s32.totalorder %s195, %s197
      %p204 = scmp.eq.s32.totalorder %s30, 1
      %p205 = por %p203, %p204
      %p206 = scmp.ne.s32.totalorder %s197, %s198
      %p207 = scmp.eq.s32.totalorder %s30, 0
      %p208 = por %p206, %p207
      %p209 = scmp.ne.s32.totalorder %s197, %s198
      %p210 = scmp.eq.s32.totalorder %s31, 1
      %p211 = por %p209, %p210
      %p213 = scmp.ne.s32.totalorder %s198, %s212
      %p214 = scmp.eq.s32.totalorder %s31, 0
      %p215 = por %p213, %p214
      %s217 = sadd.s32 %s216, 1
      %p220 = scmp.eq.s32.totalorder %s25, 1
      %p221 = scmp.ne.s32.totalorder %s216, %s218
      %p222 = scmp.eq.s32.totalorder %s25, 0
      %p223 = por %p221, %p222
      %p224 = scmp.ne.s32.totalorder %s216, %s218
      %p225 = scmp.eq.s32.totalorder %s30, 1
      %p226 = por %p224, %p225
      %p227 = scmp.ne.s32.totalorder %s218, %s219
      %p228 = scmp.eq.s32.totalorder %s30, 0
      %p229 = por %p227, %p228
      %p230 = scmp.ne.s32.totalorder %s218, %s219
      %p231 = scmp.eq.s32.totalorder %s31, 1
      %p232 = por %p230, %p231
      %p234 = scmp.ne.s32.totalorder %s219, %s233
      %p235 = scmp.eq.s32.totalorder %s31, 0
      %p236 = por %p234, %p235
      %s238 = sadd.s32 %s237, 1
      %p241 = scmp.eq.s32.totalorder %s25, 1
      %p242 = scmp.ne.s32.totalorder %s237, %s239
      %p243 = scmp.eq.s32.totalorder %s25, 0
      %p244 = por %p242, %p243
      %p245 = scmp.ne.s32.totalorder %s237, %s239
      %p246 = scmp.eq.s32.totalorder %s30, 1
      %p247 = por %p245, %p246
      %p248 = scmp.ne.s32.totalorder %s239, %s240
      %p249 = scmp.eq.s32.totalorder %s30, 0
      %p250 = por %p248, %p249
      %p251 = scmp.ne.s32.totalorder %s239, %s240
      %p252 = scmp.eq.s32.totalorder %s31, 1
      %p253 = por %p251, %p252
      %p255 = scmp.ne.s32.totalorder %s240, %s254
      %p256 = scmp.eq.s32.totalorder %s31, 0
      %p257 = por %p255, %p256
      %s259 = sadd.s32 %s258, 1
      %p262 = scmp.eq.s32.totalorder %s25, 1
      %p263 = scmp.ne.s32.totalorder %s258, %s260
      %p264 = scmp.eq.s32.totalorder %s25, 0
      %p265 = por %p263, %p264
      %p266 = scmp.ne.s32.totalorder %s258, %s260
      %p267 = scmp.eq.s32.totalorder %s30, 1
      %p268 = por %p266, %p267
      %p269 = scmp.ne.s32.totalorder %s260, %s261
      %p270 = scmp.eq.s32.totalorder %s30, 0
      %p271 = por %p269, %p270
      %p272 = scmp.ne.s32.totalorder %s260, %s261
      %p273 = scmp.eq.s32.totalorder %s31, 1
      %p274 = por %p272, %p273
      %p276 = scmp.ne.s32.totalorder %s261, %s275
      %p277 = scmp.eq.s32.totalorder %s31, 0
      %p278 = por %p276, %p277
      %s279 = ssub.s32 %s25, %s32
      %p280 = scmp.eq.s32.totalorder %s279, 0
      %s282 = sadd.s32 %s281, 1
      %s283 = scalar_select %p280, %s281, %s282
      %p286 = pneg %p280
      %p287 = scmp.eq.s32.totalorder %s25, 1
      %p288 = por %p286, %p287
      %p289 = scmp.ne.s32.totalorder %s281, %s284
      %p290 = scmp.eq.s32.totalorder %s25, 0
      %p291 = por %p289, %p290
      %p292 = scmp.ne.s32.totalorder %s281, %s284
      %p293 = scmp.eq.s32.totalorder %s30, 1
      %p294 = por %p292, %p293
      %p295 = scmp.ne.s32.totalorder %s284, %s285
      %p296 = scmp.eq.s32.totalorder %s30, 0
      %p297 = por %p295, %p296
      %p298 = scmp.ne.s32.totalorder %s284, %s285
      %p299 = scmp.eq.s32.totalorder %s31, 1
      %p300 = por %p298, %p299
      %p302 = scmp.ne.s32.totalorder %s285, %s301
      %p303 = scmp.eq.s32.totalorder %s31, 0
      %p304 = por %p302, %p303
      %s305 = ssub.s32 %s25, %s32
      %p306 = scmp.eq.s32.totalorder %s305, 0
      %s308 = sadd.s32 %s307, 1
      %s309 = scalar_select %p306, %s307, %s308
      %p312 = pneg %p306
      %p313 = scmp.eq.s32.totalorder %s25, 1
      %p314 = por %p312, %p313
      %p315 = scmp.ne.s32.totalorder %s307, %s310
      %p316 = scmp.eq.s32.totalorder %s25, 0
      %p317 = por %p315, %p316
      %p318 = scmp.ne.s32.totalorder %s307, %s310
      %p319 = scmp.eq.s32.totalorder %s30, 1
      %p320 = por %p318, %p319
      %p321 = scmp.ne.s32.totalorder %s310, %s311
      %p322 = scmp.eq.s32.totalorder %s30, 0
      %p323 = por %p321, %p322
      %p324 = scmp.ne.s32.totalorder %s310, %s311
      %p325 = scmp.eq.s32.totalorder %s31, 1
      %p326 = por %p324, %p325
      %p328 = scmp.ne.s32.totalorder %s311, %s327
      %p329 = scmp.eq.s32.totalorder %s31, 0
      %p330 = por %p328, %p329
      %p331 = scmp.le.s32.totalorder 1, %s25
      %p332 = scmp.lt.s32.totalorder %s25, 3
      %p333 = pnand %p331, %p332
      %p334 = pneg %p333
      // Predicated region
      $region9: #{multi_head_attention.1} parent=5 // pred_check
        _
      $region10: #{multi_head_attention.1} parent=5 // pred_check_branch
        %336 = sbr.rel (%p333) target = $region12
      $region11: #{multi_head_attention.1} parent=5 // pred_region
        %s337 = ssub.s32 %s25, 1
        // Predicated region
        $region13: #{multi_head_attention.1} parent=11 // pred_check
          %p338 = pneg %p124
        $region14: #{multi_head_attention.1} parent=11 // pred_check_branch
          %340 = sbr.rel (%p338) target = $region16
        $region15: #{multi_head_attention.1} parent=11 // pred_region
          _
        $region16: #{multi_head_attention.1} parent=11 // pred_fallthru
          _
        // Predicated region
        $region17: #{multi_head_attention.1} parent=11 // pred_check
          %p341 = pneg %p145
        $region18: #{multi_head_attention.1} parent=11 // pred_check_branch
          %343 = sbr.rel (%p341) target = $region20
        $region19: #{multi_head_attention.1} parent=11 // pred_region
          _
        $region20: #{multi_head_attention.1} parent=11 // pred_fallthru
          _
        // Predicated region
        $region21: #{multi_head_attention.1} parent=11 // pred_check
          %p344 = pneg %p166
        $region22: #{multi_head_attention.1} parent=11 // pred_check_branch
          %346 = sbr.rel (%p344) target = $region24
        $region23: #{multi_head_attention.1} parent=11 // pred_region
          _
        $region24: #{multi_head_attention.1} parent=11 // pred_fallthru
          _
        // Predicated region
        $region25: #{multi_head_attention.1} parent=11 // pred_check
          %p347 = pneg %p187
        $region26: #{multi_head_attention.1} parent=11 // pred_check_branch
          %349 = sbr.rel (%p347) target = $region28
        $region27: #{multi_head_attention.1} parent=11 // pred_region
          _
        $region28: #{multi_head_attention.1} parent=11 // pred_fallthru
          _
        // Predicated region
        $region29: #{multi_head_attention.1} parent=11 // pred_check
          %p350 = pneg %p208
        $region30: #{multi_head_attention.1} parent=11 // pred_check_branch
          %352 = sbr.rel (%p350) target = $region32
        $region31: #{multi_head_attention.1} parent=11 // pred_region
          _
        $region32: #{multi_head_attention.1} parent=11 // pred_fallthru
          _
        // Predicated region
        $region33: #{multi_head_attention.1} parent=11 // pred_check
          %p353 = pneg %p229
        $region34: #{multi_head_attention.1} parent=11 // pred_check_branch
          %355 = sbr.rel (%p353) target = $region36
        $region35: #{multi_head_attention.1} parent=11 // pred_region
          _
        $region36: #{multi_head_attention.1} parent=11 // pred_fallthru
          _
        // Predicated region
        $region37: #{multi_head_attention.1} parent=11 // pred_check
          %p356 = pneg %p250
        $region38: #{multi_head_attention.1} parent=11 // pred_check_branch
          %358 = sbr.rel (%p356) target = $region40
        $region39: #{multi_head_attention.1} parent=11 // pred_region
          _
        $region40: #{multi_head_attention.1} parent=11 // pred_fallthru
          _
        // Predicated region
        $region41: #{multi_head_attention.1} parent=11 // pred_check
          %p359 = pneg %p271
        $region42: #{multi_head_attention.1} parent=11 // pred_check_branch
          %361 = sbr.rel (%p359) target = $region44
        $region43: #{multi_head_attention.1} parent=11 // pred_region
          _
        $region44: #{multi_head_attention.1} parent=11 // pred_fallthru
          _
      $region12: #{multi_head_attention.1} parent=5 // pred_fallthru
        _
      %p362 = scmp.lt.s32.totalorder %s25, 2
      // Predicated region
      $region45: #{multi_head_attention.1} parent=5 // pred_check
        %p363 = pneg %p362
      $region46: #{multi_head_attention.1} parent=5 // pred_check_branch
        %365 = sbr.rel (%p363) target = $region48
      $region47: #{multi_head_attention.1} parent=5 // pred_region
        // Predicated region
        $region49: #{multi_head_attention.1} parent=47 // pred_check
          %p366 = pneg %p45
        $region50: #{multi_head_attention.1} parent=47 // pred_check_branch
          %368 = sbr.rel (%p366) target = $region52
        $region51: #{multi_head_attention.1} parent=47 // pred_region
          %p369 = scmp.lt.s32.totalorder %s25, 1
          %s370 = scalar_select %p369, %s25, 1
          %s371 = smul.addr %s370, 8
          %s372 = scalar_lea.vmem %s0, %s371
        $region52: #{multi_head_attention.1} parent=47 // pred_fallthru
          _
        // Predicated region
        $region53: #{multi_head_attention.1} parent=47 // pred_check
          %p373 = pneg %p71
        $region54: #{multi_head_attention.1} parent=47 // pred_check_branch
          %375 = sbr.rel (%p373) target = $region56
        $region55: #{multi_head_attention.1} parent=47 // pred_region
          %p376 = scmp.lt.s32.totalorder %s25, 1
          %s377 = scalar_select %p376, %s25, 1
          %s378 = smul.addr %s377, 8
          %s379 = scalar_lea.vmem %s1, %s378
        $region56: #{multi_head_attention.1} parent=47 // pred_fallthru
          _
        // Predicated region
        $region57: #{multi_head_attention.1} parent=47 // pred_check
          %p380 = pneg %p97
        $region58: #{multi_head_attention.1} parent=47 // pred_check_branch
          %382 = sbr.rel (%p380) target = $region60
        $region59: #{multi_head_attention.1} parent=47 // pred_region
          %p383 = scmp.lt.s32.totalorder %s25, 1
          %s384 = scalar_select %p383, %s25, 1
          %s385 = smul.addr %s384, 8
          %s386 = scalar_lea.vmem %s2, %s385
        $region60: #{multi_head_attention.1} parent=47 // pred_fallthru
          _
      $region48: #{multi_head_attention.1} parent=5 // pred_fallthru
        _
      %p387 = scmp.le.s32.totalorder 1, %s25
      %p388 = scmp.lt.s32.totalorder %s25, 3
      %p389 = pnand %p387, %p388
      %p390 = pneg %p389
      // Predicated region
      $region61: #{multi_head_attention.1} parent=5 // pred_check
        _
      $region62: #{multi_head_attention.1} parent=5 // pred_check_branch
        %392 = sbr.rel (%p389) target = $region64
      $region63: #{multi_head_attention.1} parent=5 // pred_region
        %s393 = ssub.s32 %s25, 1
        %p394 = scmp.lt.s32.totalorder %s30, 1
        %s395 = scalar_select %p394, %s30, 1
        %s396 = smul.addr %s395, 8
        %s397 = scalar_lea.vmem %s0, %s396
        %p398 = pneg %p51
        %p399 = pneg %p48
        %p400 = scmp.lt.s32.totalorder %s30, 1
        %s401 = scalar_select %p400, %s30, 1
        %s402 = smul.addr %s401, 8
        %s403 = scalar_lea.vmem %s1, %s402
        %p404 = pneg %p77
        %p405 = pneg %p74
        %p406 = scmp.lt.s32.totalorder %s30, 1
        %s407 = scalar_select %p406, %s30, 1
        %s408 = smul.addr %s407, 8
        %s409 = scalar_lea.vmem %s2, %s408
        %p410 = pneg %p103
        %p411 = pneg %p100
        %p412 = pneg %p124
        %p413 = pneg %p121
        %p414 = pneg %p145
        %p415 = pneg %p142
        %p416 = pneg %p166
        %p417 = pneg %p163
        %p418 = pneg %p187
        %p419 = pneg %p184
        %p420 = pneg %p208
        %p421 = pneg %p205
        %p422 = pneg %p229
        %p423 = pneg %p226
        %p424 = pneg %p250
        %p425 = pneg %p247
        %p426 = pneg %p271
        %p427 = pneg %p268
        %p428 = pneg %p297
        %p429 = pneg %p294
        %s430 = sand.u32 %s284, 1
        %s431 = scalar_lea.sflag [#allocation3], %s430
        %s432 = sand.u32 %s284, 1
        %s433 = smul.addr %s432, 8
        %s434 = scalar_lea.vmem [#allocation2], %s433
        %p435 = pneg %p323
        %p436 = pneg %p320
        %s437 = sand.u32 %s310, 1
        %s438 = scalar_lea.sflag [#allocation5], %s437
        %s439 = sand.u32 %s310, 1
        %s440 = smul.addr %s439, 32
        %s441 = scalar_lea.vmem [#allocation4], %s440
        %p442 = scmp.lt.s32.totalorder %s30, 1
        %s443 = scalar_select %p442, %s30, 1
        %s444 = smul.addr %s443, 8
        %s445 = scalar_lea.vmem %s0, %s444
        %p446 = scmp.lt.s32.totalorder %s30, 1
        %s447 = scalar_select %p446, %s30, 1
        %s448 = smul.addr %s447, 8
        %s449 = scalar_lea.vmem %s1, %s448
        %p450 = scmp.lt.s32.totalorder %s30, 1
        %s451 = scalar_select %p450, %s30, 1
        %s452 = smul.addr %s451, 8
        %s453 = scalar_lea.vmem %s2, %s452
        %v454 = vld [vmem:[%s445] sm:$0xff]
        %v455 = vld [vmem:[%s449] sm:$0xff]
        %v456 = vld [vmem:[%s453] sm:$0xff]
        %v457 = vld [vmem:[%s3] sm:$0xff]
        %v458 = vld [vmem:[%s3 + $0x8] sm:$0xff]
        %v459 = vld [vmem:[%s3 + $0x10] sm:$0xff]
        %v460 = vld [vmem:[%s3 + $0x18] sm:$0xff]
        %v461 = vld [vmem:[%s6] sm:$0x1]
        %v463 = vlaneseq
        %v464 = vshrl.u32 %v463, 7
        %v465 = vsub.s32 0, %v464
        %v466 = vrot.slane %v461, %v465
        %vm468 = vcmask 261120
        %v470 = vsel %vm468, %v454, 0
        %472 = vmatprep.subr.mxu0 0.0
        %473 = vmatpush1.msra.mxu0 %v457
        %474 = vmatprep.subr.mxu0 0.0
        %475 = vmatpush1.msra.mxu0 %v458
        %476 = vmatprep.subr.mxu0 0.0
        %477 = vmatpush1.msra.mxu0 %v459
        %478 = vmatprep.subr.mxu0 0.0
        %479 = vmatpush1.msra.mxu0 %v460
        %480 = vmatprep.subr.mxu0 0.0
        %481 = vmatpush1.msra.mxu0 0.0
        %482 = vmatprep.subr.mxu0 0.0
        %483 = vmatpush1.msra.mxu0 0.0
        %484 = vmatprep.subr.mxu0 0.0
        %485 = vmatpush1.msra.mxu0 0.0
        %486 = vmatprep.subr.mxu0 0.0
        %487 = vmatpush1.msra.mxu0 0.0
        %488 = vmatprep.subr.mxu0 0.0
        %489 = vmatpush1.msra.mxu0 0.0
        %490 = vmatprep.subr.mxu0 0.0
        %491 = vmatpush1.msra.mxu0 0.0
        %492 = vmatprep.subr.mxu0 0.0
        %493 = vmatpush1.msra.mxu0 0.0
        %494 = vmatprep.subr.mxu0 0.0
        %495 = vmatpush1.msra.mxu0 0.0
        %496 = vmatprep.subr.mxu0 0.0
        %497 = vmatpush1.msra.mxu0 0.0
        %498 = vmatprep.subr.mxu0 0.0
        %499 = vmatpush1.msra.mxu0 0.0
        %500 = vmatprep.subr.mxu0 0.0
        %501 = vmatpush1.msra.mxu0 0.0
        %502 = vmatprep.subr.mxu0 0.0
        %503 = vmatpush1.msra.mxu0 0.0
        %504 = vmatprep.subr.mxu0 0.0
        %505 = vmatpush1.msra.mxu0 0.0
        %506 = vmatprep.subr.mxu0 0.0
        %507 = vmatpush1.msra.mxu0 0.0
        %508 = vmatprep.subr.mxu0 0.0
        %509 = vmatpush1.msra.mxu0 0.0
        %510 = vmatprep.subr.mxu0 0.0
        %511 = vmatpush1.msra.mxu0 0.0
        %512 = vmatprep.subr.mxu0 0.0
        %513 = vmatpush1.msra.mxu0 0.0
        %514 = vmatprep.subr.mxu0 0.0
        %515 = vmatpush1.msra.mxu0 0.0
        %516 = vmatprep.subr.mxu0 0.0
        %517 = vmatpush1.msra.mxu0 0.0
        %518 = vmatprep.subr.mxu0 0.0
        %519 = vmatpush1.msra.mxu0 0.0
        %520 = vmatprep.subr.mxu0 0.0
        %521 = vmatpush1.msra.mxu0 0.0
        %522 = vmatprep.subr.mxu0 0.0
        %523 = vmatpush1.msra.mxu0 0.0
        %524 = vmatprep.subr.mxu0 0.0
        %525 = vmatpush1.msra.mxu0 0.0
        %526 = vmatprep.subr.mxu0 0.0
        %527 = vmatpush1.msra.mxu0 0.0
        %528 = vmatprep.subr.mxu0 0.0
        %529 = vmatpush1.msra.mxu0 0.0
        %530 = vmatprep.subr.mxu0 0.0
        %531 = vmatpush1.msra.mxu0 0.0
        %532 = vmatprep.subr.mxu0 0.0
        %533 = vmatpush1.msra.mxu0 0.0
        %534 = vmatprep.subr.mxu0 0.0
        %535 = vmatpush1.msra.mxu0 0.0
        %536 = vmatprep.mubr.f32.mxu0 0.0
        %537 = vmatmul.mubr.f32.gmra.mrb[0].mxu0 %v470
        %v538 = vpop.f32.mrb[0].mxu0
        %v539 = vadd.f32 %v466, %v538
        %v540 = vpop.f32.mrb[0].mxu0
        %541 = vdwg.mxu0
        %v542 = vld [vmem:[%s4] sm:$0xff]
        %v543 = vld [vmem:[%s4 + $0x8] sm:$0xff]
        %v544 = vld [vmem:[%s4 + $0x10] sm:$0xff]
        %v545 = vld [vmem:[%s4 + $0x18] sm:$0xff]
        %v546 = vld [vmem:[%s7] sm:$0x1]
        %v548 = vlaneseq
        %v549 = vshrl.u32 %v548, 7
        %v550 = vsub.s32 0, %v549
        %v551 = vrot.slane %v546, %v550
        %v554 = vsel %vm468, %v455, 0
        %556 = vmatprep.subr.mxu0 0.0
        %557 = vmatpush1.msra.mxu0 %v542
        %558 = vmatprep.subr.mxu0 0.0
        %559 = vmatpush1.msra.mxu0 %v543
        %560 = vmatprep.subr.mxu0 0.0
        %561 = vmatpush1.msra.mxu0 %v544
        %562 = vmatprep.subr.mxu0 0.0
        %563 = vmatpush1.msra.mxu0 %v545
        %564 = vmatprep.subr.mxu0 0.0
        %565 = vmatpush1.msra.mxu0 0.0
        %566 = vmatprep.subr.mxu0 0.0
        %567 = vmatpush1.msra.mxu0 0.0
        %568 = vmatprep.subr.mxu0 0.0
        %569 = vmatpush1.msra.mxu0 0.0
        %570 = vmatprep.subr.mxu0 0.0
        %571 = vmatpush1.msra.mxu0 0.0
        %572 = vmatprep.subr.mxu0 0.0
        %573 = vmatpush1.msra.mxu0 0.0
        %574 = vmatprep.subr.mxu0 0.0
        %575 = vmatpush1.msra.mxu0 0.0
        %576 = vmatprep.subr.mxu0 0.0
        %577 = vmatpush1.msra.mxu0 0.0
        %578 = vmatprep.subr.mxu0 0.0
        %579 = vmatpush1.msra.mxu0 0.0
        %580 = vmatprep.subr.mxu0 0.0
        %581 = vmatpush1.msra.mxu0 0.0
        %582 = vmatprep.subr.mxu0 0.0
        %583 = vmatpush1.msra.mxu0 0.0
        %584 = vmatprep.subr.mxu0 0.0
        %585 = vmatpush1.msra.mxu0 0.0
        %586 = vmatprep.subr.mxu0 0.0
        %587 = vmatpush1.msra.mxu0 0.0
        %588 = vmatprep.subr.mxu0 0.0
        %589 = vmatpush1.msra.mxu0 0.0
        %590 = vmatprep.subr.mxu0 0.0
        %591 = vmatpush1.msra.mxu0 0.0
        %592 = vmatprep.subr.mxu0 0.0
        %593 = vmatpush1.msra.mxu0 0.0
        %594 = vmatprep.subr.mxu0 0.0
        %595 = vmatpush1.msra.mxu0 0.0
        %596 = vmatprep.subr.mxu0 0.0
        %597 = vmatpush1.msra.mxu0 0.0
        %598 = vmatprep.subr.mxu0 0.0
        %599 = vmatpush1.msra.mxu0 0.0
        %600 = vmatprep.subr.mxu0 0.0
        %601 = vmatpush1.msra.mxu0 0.0
        %602 = vmatprep.subr.mxu0 0.0
        %603 = vmatpush1.msra.mxu0 0.0
        %604 = vmatprep.subr.mxu0 0.0
        %605 = vmatpush1.msra.mxu0 0.0
        %606 = vmatprep.subr.mxu0 0.0
        %607 = vmatpush1.msra.mxu0 0.0
        %608 = vmatprep.subr.mxu0 0.0
        %609 = vmatpush1.msra.mxu0 0.0
        %610 = vmatprep.subr.mxu0 0.0
        %611 = vmatpush1.msra.mxu0 0.0
        %612 = vmatprep.subr.mxu0 0.0
        %613 = vmatpush1.msra.mxu0 0.0
        %614 = vmatprep.subr.mxu0 0.0
        %615 = vmatpush1.msra.mxu0 0.0
        %616 = vmatprep.subr.mxu0 0.0
        %617 = vmatpush1.msra.mxu0 0.0
        %618 = vmatprep.subr.mxu0 0.0
        %619 = vmatpush1.msra.mxu0 0.0
        %620 = vmatprep.mubr.f32.mxu0 0.0
        %621 = vmatmul.mubr.f32.gmra.mrb[0].mxu0 %v554
        %v622 = vpop.f32.mrb[0].mxu0
        %v623 = vadd.f32 %v551, %v622
        %v624 = vpop.f32.mrb[0].mxu0
        %625 = vdwg.mxu0
        %v626 = vld [vmem:[%s5] sm:$0xff]
        %v627 = vld [vmem:[%s5 + $0x8] sm:$0xff]
        %v628 = vld [vmem:[%s5 + $0x10] sm:$0xff]
        %v629 = vld [vmem:[%s5 + $0x18] sm:$0xff]
        %v630 = vld [vmem:[%s8] sm:$0x1]
        %v632 = vlaneseq
        %v633 = vshrl.u32 %v632, 7
        %v634 = vsub.s32 0, %v633
        %v635 = vrot.slane %v630, %v634
        %v638 = vsel %vm468, %v456, 0
        %640 = vmatprep.subr.mxu0 0.0
        %641 = vmatpush1.msra.mxu0 %v626
        %642 = vmatprep.subr.mxu0 0.0
        %643 = vmatpush1.msra.mxu0 %v627
        %644 = vmatprep.subr.mxu0 0.0
        %645 = vmatpush1.msra.mxu0 %v628
        %646 = vmatprep.subr.mxu0 0.0
        %647 = vmatpush1.msra.mxu0 %v629
        %648 = vmatprep.subr.mxu0 0.0
        %649 = vmatpush1.msra.mxu0 0.0
        %650 = vmatprep.subr.mxu0 0.0
        %651 = vmatpush1.msra.mxu0 0.0
        %652 = vmatprep.subr.mxu0 0.0
        %653 = vmatpush1.msra.mxu0 0.0
        %654 = vmatprep.subr.mxu0 0.0
        %655 = vmatpush1.msra.mxu0 0.0
        %656 = vmatprep.subr.mxu0 0.0
        %657 = vmatpush1.msra.mxu0 0.0
        %658 = vmatprep.subr.mxu0 0.0
        %659 = vmatpush1.msra.mxu0 0.0
        %660 = vmatprep.subr.mxu0 0.0
        %661 = vmatpush1.msra.mxu0 0.0
        %662 = vmatprep.subr.mxu0 0.0
        %663 = vmatpush1.msra.mxu0 0.0
        %664 = vmatprep.subr.mxu0 0.0
        %665 = vmatpush1.msra.mxu0 0.0
        %666 = vmatprep.subr.mxu0 0.0
        %667 = vmatpush1.msra.mxu0 0.0
        %668 = vmatprep.subr.mxu0 0.0
        %669 = vmatpush1.msra.mxu0 0.0
        %670 = vmatprep.subr.mxu0 0.0
        %671 = vmatpush1.msra.mxu0 0.0
        %672 = vmatprep.subr.mxu0 0.0
        %673 = vmatpush1.msra.mxu0 0.0
        %674 = vmatprep.subr.mxu0 0.0
        %675 = vmatpush1.msra.mxu0 0.0
        %676 = vmatprep.subr.mxu0 0.0
        %677 = vmatpush1.msra.mxu0 0.0
        %678 = vmatprep.subr.mxu0 0.0
        %679 = vmatpush1.msra.mxu0 0.0
        %680 = vmatprep.subr.mxu0 0.0
        %681 = vmatpush1.msra.mxu0 0.0
        %682 = vmatprep.subr.mxu0 0.0
        %683 = vmatpush1.msra.mxu0 0.0
        %684 = vmatprep.subr.mxu0 0.0
        %685 = vmatpush1.msra.mxu0 0.0
        %686 = vmatprep.subr.mxu0 0.0
        %687 = vmatpush1.msra.mxu0 0.0
        %688 = vmatprep.subr.mxu0 0.0
        %689 = vmatpush1.msra.mxu0 0.0
        %690 = vmatprep.subr.mxu0 0.0
        %691 = vmatpush1.msra.mxu0 0.0
        %692 = vmatprep.subr.mxu0 0.0
        %693 = vmatpush1.msra.mxu0 0.0
        %694 = vmatprep.subr.mxu0 0.0
        %695 = vmatpush1.msra.mxu0 0.0
        %696 = vmatprep.subr.mxu0 0.0
        %697 = vmatpush1.msra.mxu0 0.0
        %698 = vmatprep.subr.mxu0 0.0
        %699 = vmatpush1.msra.mxu0 0.0
        %700 = vmatprep.subr.mxu0 0.0
        %701 = vmatpush1.msra.mxu0 0.0
        %702 = vmatprep.subr.mxu0 0.0
        %703 = vmatpush1.msra.mxu0 0.0
        %704 = vmatprep.mubr.f32.mxu0 0.0
        %705 = vmatmul.mubr.f32.gmra.mrb[0].mxu0 %v638
        %v706 = vpop.f32.mrb[0].mxu0
        %v707 = vadd.f32 %v635, %v706
        %v708 = vpop.f32.mrb[0].mxu0
        %709 = vdwg.mxu0
        %vm710 = vcmask 64512
        %v712 = vsel %vm710, %v539, 0
        %v715 = vsel %vm710, %v623, 0
        %717 = vmatprep.subr.mxu0 0.0
        %718 = vmatpush1.xpose.msra.mxu0 %v715
        %719 = vmatprep.subr.mxu0 0.0
        %720 = vmatpush1.xpose.msra.mxu0 0.0
        %721 = vmatprep.subr.mxu0 0.0
        %722 = vmatpush1.xpose.msra.mxu0 0.0
        %723 = vmatprep.subr.mxu0 0.0
        %724 = vmatpush1.xpose.msra.mxu0 0.0
        %725 = vmatprep.subr.mxu0 0.0
        %726 = vmatpush1.xpose.msra.mxu0 0.0
        %727 = vmatprep.subr.mxu0 0.0
        %728 = vmatpush1.xpose.msra.mxu0 0.0
        %729 = vmatprep.subr.mxu0 0.0
        %730 = vmatpush1.xpose.msra.mxu0 0.0
        %731 = vmatprep.subr.mxu0 0.0
        %732 = vmatpush1.xpose.msra.mxu0 0.0
        %733 = vmatprep.subr.mxu0 0.0
        %734 = vmatpush1.xpose.msra.mxu0 0.0
        %735 = vmatprep.subr.mxu0 0.0
        %736 = vmatpush1.xpose.msra.mxu0 0.0
        %737 = vmatprep.subr.mxu0 0.0
        %738 = vmatpush1.xpose.msra.mxu0 0.0
        %739 = vmatprep.subr.mxu0 0.0
        %740 = vmatpush1.xpose.msra.mxu0 0.0
        %741 = vmatprep.subr.mxu0 0.0
        %742 = vmatpush1.xpose.msra.mxu0 0.0
        %743 = vmatprep.subr.mxu0 0.0
        %744 = vmatpush1.xpose.msra.mxu0 0.0
        %745 = vmatprep.subr.mxu0 0.0
        %746 = vmatpush1.xpose.msra.mxu0 0.0
        %747 = vmatprep.subr.mxu0 0.0
        %748 = vmatpush1.xpose.msra.mxu0 0.0
        %749 = vmatprep.subr.mxu0 0.0
        %750 = vmatpush1.xpose.msra.mxu0 0.0
        %751 = vmatprep.subr.mxu0 0.0
        %752 = vmatpush1.xpose.msra.mxu0 0.0
        %753 = vmatprep.subr.mxu0 0.0
        %754 = vmatpush1.xpose.msra.mxu0 0.0
        %755 = vmatprep.subr.mxu0 0.0
        %756 = vmatpush1.xpose.msra.mxu0 0.0
        %757 = vmatprep.subr.mxu0 0.0
        %758 = vmatpush1.xpose.msra.mxu0 0.0
        %759 = vmatprep.subr.mxu0 0.0
        %760 = vmatpush1.xpose.msra.mxu0 0.0
        %761 = vmatprep.subr.mxu0 0.0
        %762 = vmatpush1.xpose.msra.mxu0 0.0
        %763 = vmatprep.subr.mxu0 0.0
        %764 = vmatpush1.xpose.msra.mxu0 0.0
        %765 = vmatprep.subr.mxu0 0.0
        %766 = vmatpush1.xpose.msra.mxu0 0.0
        %767 = vmatprep.subr.mxu0 0.0
        %768 = vmatpush1.xpose.msra.mxu0 0.0
        %769 = vmatprep.subr.mxu0 0.0
        %770 = vmatpush1.xpose.msra.mxu0 0.0
        %771 = vmatprep.subr.mxu0 0.0
        %772 = vmatpush1.xpose.msra.mxu0 0.0
        %773 = vmatprep.subr.mxu0 0.0
        %774 = vmatpush1.xpose.msra.mxu0 0.0
        %775 = vmatprep.subr.mxu0 0.0
        %776 = vmatpush1.xpose.msra.mxu0 0.0
        %777 = vmatprep.subr.mxu0 0.0
        %778 = vmatpush1.xpose.msra.mxu0 0.0
        %779 = vmatprep.subr.mxu0 0.0
        %780 = vmatpush1.xpose.msra.mxu0 0.0
        %781 = vmatprep.mubr.f32.mxu0 0.0
        %782 = vmatmul.mubr.f32.gmra.mrb[0].mxu0 %v712
        %v783 = vpop.f32.mrb[0].mxu0
        %v784 = vadd.f32 0.0, %v783
        %v785 = vpop.f32.mrb[0].mxu0
        %786 = vdwg.mxu0
        %v787 = vsel %vm710, %v784, -inf
        %788 = vmax.xlane.f32.xlu0 %v787
        %v789 = vpop.xlane.xlu0 %788
        %v790 = vsub.f32 %v784, %v789
        %v791 = vmul.f32 %v790, 1.442695
        %v792 = vpow.pop %v791
        %v793 = vsel %vm710, %v792, 0.0
        %794 = vadd.xlane.f32.xlu0 %v793
        %v795 = vpop.xlane.xlu0 %794
        %v796 = vrcp.pop %v795
        %v797 = vmul.f32 %v795, %v796
        %v798 = vsub.f32 2.0, %v797
        %v799 = vmul.f32 %v796, %v798
        %v800 = vmul.f32 %v792, %v799
        %801 = vst.msk [vmem:[%s441] sm:$0xff] %vm710, %v800
        %v803 = vsel %vm710, %v800, 0
        %805 = vmatprep.subr.mxu0 0.0
        %806 = vmatpush1.msra.mxu0 %v707
        %807 = vmatprep.subr.mxu0 0.0
        %808 = vmatpush1.msra.mxu0 0.0
        %809 = vmatprep.subr.mxu0 0.0
        %810 = vmatpush1.msra.mxu0 0.0
        %811 = vmatprep.subr.mxu0 0.0
        %812 = vmatpush1.msra.mxu0 0.0
        %813 = vmatprep.subr.mxu0 0.0
        %814 = vmatpush1.msra.mxu0 0.0
        %815 = vmatprep.subr.mxu0 0.0
        %816 = vmatpush1.msra.mxu0 0.0
        %817 = vmatprep.subr.mxu0 0.0
        %818 = vmatpush1.msra.mxu0 0.0
        %819 = vmatprep.subr.mxu0 0.0
        %820 = vmatpush1.msra.mxu0 0.0
        %821 = vmatprep.subr.mxu0 0.0
        %822 = vmatpush1.msra.mxu0 0.0
        %823 = vmatprep.subr.mxu0 0.0
        %824 = vmatpush1.msra.mxu0 0.0
        %825 = vmatprep.subr.mxu0 0.0
        %826 = vmatpush1.msra.mxu0 0.0
        %827 = vmatprep.subr.mxu0 0.0
        %828 = vmatpush1.msra.mxu0 0.0
        %829 = vmatprep.subr.mxu0 0.0
        %830 = vmatpush1.msra.mxu0 0.0
        %831 = vmatprep.subr.mxu0 0.0
        %832 = vmatpush1.msra.mxu0 0.0
        %833 = vmatprep.subr.mxu0 0.0
        %834 = vmatpush1.msra.mxu0 0.0
        %835 = vmatprep.subr.mxu0 0.0
        %836 = vmatpush1.msra.mxu0 0.0
        %837 = vmatprep.subr.mxu0 0.0
        %838 = vmatpush1.msra.mxu0 0.0
        %839 = vmatprep.subr.mxu0 0.0
        %840 = vmatpush1.msra.mxu0 0.0
        %841 = vmatprep.subr.mxu0 0.0
        %842 = vmatpush1.msra.mxu0 0.0
        %843 = vmatprep.subr.mxu0 0.0
        %844 = vmatpush1.msra.mxu0 0.0
        %845 = vmatprep.subr.mxu0 0.0
        %846 = vmatpush1.msra.mxu0 0.0
        %847 = vmatprep.subr.mxu0 0.0
        %848 = vmatpush1.msra.mxu0 0.0
        %849 = vmatprep.subr.mxu0 0.0
        %850 = vmatpush1.msra.mxu0 0.0
        %851 = vmatprep.subr.mxu0 0.0
        %852 = vmatpush1.msra.mxu0 0.0
        %853 = vmatprep.subr.mxu0 0.0
        %854 = vmatpush1.msra.mxu0 0.0
        %855 = vmatprep.subr.mxu0 0.0
        %856 = vmatpush1.msra.mxu0 0.0
        %857 = vmatprep.subr.mxu0 0.0
        %858 = vmatpush1.msra.mxu0 0.0
        %859 = vmatprep.subr.mxu0 0.0
        %860 = vmatpush1.msra.mxu0 0.0
        %861 = vmatprep.subr.mxu0 0.0
        %862 = vmatpush1.msra.mxu0 0.0
        %863 = vmatprep.subr.mxu0 0.0
        %864 = vmatpush1.msra.mxu0 0.0
        %865 = vmatprep.subr.mxu0 0.0
        %866 = vmatpush1.msra.mxu0 0.0
        %867 = vmatprep.subr.mxu0 0.0
        %868 = vmatpush1.msra.mxu0 0.0
        %869 = vmatprep.mubr.f32.mxu0 0.0
        %870 = vmatmul.mubr.f32.gmra.mrb[0].mxu0 %v803
        %v871 = vpop.f32.mrb[0].mxu0
        %v872 = vadd.f32 0.0, %v871
        %v873 = vpop.f32.mrb[0].mxu0
        %874 = vdwg.mxu0
        %v875 = vld [vmem:[%s9] sm:$0xff]
        %s876 = scalar_lea.vmem %s3, 32
        %v877 = vld [vmem:[%s876] sm:$0xff]
        %v878 = vld [vmem:[%s876 + $0x8] sm:$0xff]
        %v879 = vld [vmem:[%s876 + $0x10] sm:$0xff]
        %v880 = vld [vmem:[%s876 + $0x18] sm:$0xff]
        %s881 = scalar_lea.vmem %s6, 1
        %v882 = vld [vmem:[%s881] sm:$0x1]
        %v884 = vlaneseq
        %v885 = vshrl.u32 %v884, 7
        %v886 = vsub.s32 0, %v885
        %v887 = vrot.slane %v882, %v886
        %889 = vmatprep.subr.mxu0 0.0
        %890 = vmatpush1.msra.mxu0 %v877
        %891 = vmatprep.subr.mxu0 0.0
        %892 = vmatpush1.msra.mxu0 %v878
        %893 = vmatprep.subr.mxu0 0.0
        %894 = vmatpush1.msra.mxu0 %v879
        %895 = vmatprep.subr.mxu0 0.0
        %896 = vmatpush1.msra.mxu0 %v880
        %897 = vmatprep.subr.mxu0 0.0
        %898 = vmatpush1.msra.mxu0 0.0
        %899 = vmatprep.subr.mxu0 0.0
        %900 = vmatpush1.msra.mxu0 0.0
        %901 = vmatprep.subr.mxu0 0.0
        %902 = vmatpush1.msra.mxu0 0.0
        %903 = vmatprep.subr.mxu0 0.0
        %904 = vmatpush1.msra.mxu0 0.0
        %905 = vmatprep.subr.mxu0 0.0
        %906 = vmatpush1.msra.mxu0 0.0
        %907 = vmatprep.subr.mxu0 0.0
        %908 = vmatpush1.msra.mxu0 0.0
        %909 = vmatprep.subr.mxu0 0.0
        %910 = vmatpush1.msra.mxu0 0.0
        %911 = vmatprep.subr.mxu0 0.0
        %912 = vmatpush1.msra.mxu0 0.0
        %913 = vmatprep.subr.mxu0 0.0
        %914 = vmatpush1.msra.mxu0 0.0
        %915 = vmatprep.subr.mxu0 0.0
        %916 = vmatpush1.msra.mxu0 0.0
        %917 = vmatprep.subr.mxu0 0.0
        %918 = vmatpush1.msra.mxu0 0.0
        %919 = vmatprep.subr.mxu0 0.0
        %920 = vmatpush1.msra.mxu0 0.0
        %921 = vmatprep.subr.mxu0 0.0
        %922 = vmatpush1.msra.mxu0 0.0
        %923 = vmatprep.subr.mxu0 0.0
        %924 = vmatpush1.msra.mxu0 0.0
        %925 = vmatprep.subr.mxu0 0.0
        %926 = vmatpush1.msra.mxu0 0.0
        %927 = vmatprep.subr.mxu0 0.0
        %928 = vmatpush1.msra.mxu0 0.0
        %929 = vmatprep.subr.mxu0 0.0
        %930 = vmatpush1.msra.mxu0 0.0
        %931 = vmatprep.subr.mxu0 0.0
        %932 = vmatpush1.msra.mxu0 0.0
        %933 = vmatprep.subr.mxu0 0.0
        %934 = vmatpush1.msra.mxu0 0.0
        %935 = vmatprep.subr.mxu0 0.0
        %936 = vmatpush1.msra.mxu0 0.0
        %937 = vmatprep.subr.mxu0 0.0
        %938 = vmatpush1.msra.mxu0 0.0
        %939 = vmatprep.subr.mxu0 0.0
        %940 = vmatpush1.msra.mxu0 0.0
        %941 = vmatprep.subr.mxu0 0.0
        %942 = vmatpush1.msra.mxu0 0.0
        %943 = vmatprep.subr.mxu0 0.0
        %944 = vmatpush1.msra.mxu0 0.0
        %945 = vmatprep.subr.mxu0 0.0
        %946 = vmatpush1.msra.mxu0 0.0
        %947 = vmatprep.subr.mxu0 0.0
        %948 = vmatpush1.msra.mxu0 0.0
        %949 = vmatprep.subr.mxu0 0.0
        %950 = vmatpush1.msra.mxu0 0.0
        %951 = vmatprep.subr.mxu0 0.0
        %952 = vmatpush1.msra.mxu0 0.0
        %953 = vmatprep.mubr.f32.mxu0 0.0
        %954 = vmatmul.mubr.f32.gmra.mrb[0].mxu0 %v470
        %v955 = vpop.f32.mrb[0].mxu0
        %v956 = vadd.f32 %v887, %v955
        %v957 = vpop.f32.mrb[0].mxu0
        %958 = vdwg.mxu0
        %s959 = scalar_lea.vmem %s4, 32
        %v960 = vld [vmem:[%s959] sm:$0xff]
        %v961 = vld [vmem:[%s959 + $0x8] sm:$0xff]
        %v962 = vld [vmem:[%s959 + $0x10] sm:$0xff]
        %v963 = vld [vmem:[%s959 + $0x18] sm:$0xff]
        %s964 = scalar_lea.vmem %s7, 1
        %v965 = vld [vmem:[%s964] sm:$0x1]
        %v967 = vlaneseq
        %v968 = vshrl.u32 %v967, 7
        %v969 = vsub.s32 0, %v968
        %v970 = vrot.slane %v965, %v969
        %972 = vmatprep.subr.mxu0 0.0
        %973 = vmatpush1.msra.mxu0 %v960
        %974 = vmatprep.subr.mxu0 0.0
        %975 = vmatpush1.msra.mxu0 %v961
        %976 = vmatprep.subr.mxu0 0.0
        %977 = vmatpush1.msra.mxu0 %v962
        %978 = vmatprep.subr.mxu0 0.0
        %979 = vmatpush1.msra.mxu0 %v963
        %980 = vmatprep.subr.mxu0 0.0
        %981 = vmatpush1.msra.mxu0 0.0
        %982 = vmatprep.subr.mxu0 0.0
        %983 = vmatpush1.msra.mxu0 0.0
        %984 = vmatprep.subr.mxu0 0.0
        %985 = vmatpush1.msra.mxu0 0.0
        %986 = vmatprep.subr.mxu0 0.0
        %987 = vmatpush1.msra.mxu0 0.0
        %988 = vmatprep.subr.mxu0 0.0
        %989 = vmatpush1.msra.mxu0 0.0
        %990 = vmatprep.subr.mxu0 0.0
        %991 = vmatpush1.msra.mxu0 0.0
        %992 = vmatprep.subr.mxu0 0.0
        %993 = vmatpush1.msra.mxu0 0.0
        %994 = vmatprep.subr.mxu0 0.0
        %995 = vmatpush1.msra.mxu0 0.0
        %996 = vmatprep.subr.mxu0 0.0
        %997 = vmatpush1.msra.mxu0 0.0
        %998 = vmatprep.subr.mxu0 0.0
        %999 = vmatpush1.msra.mxu0 0.0
        %1000 = vmatprep.subr.mxu0 0.0
        %1001 = vmatpush1.msra.mxu0 0.0
        %1002 = vmatprep.subr.mxu0 0.0
        %1003 = vmatpush1.msra.mxu0 0.0
        %1004 = vmatprep.subr.mxu0 0.0
        %1005 = vmatpush1.msra.mxu0 0.0
        %1006 = vmatprep.subr.mxu0 0.0
        %1007 = vmatpush1.msra.mxu0 0.0
        %1008 = vmatprep.subr.mxu0 0.0
        %1009 = vmatpush1.msra.mxu0 0.0
        %1010 = vmatprep.subr.mxu0 0.0
        %1011 = vmatpush1.msra.mxu0 0.0
        %1012 = vmatprep.subr.mxu0 0.0
        %1013 = vmatpush1.msra.mxu0 0.0
        %1014 = vmatprep.subr.mxu0 0.0
        %1015 = vmatpush1.msra.mxu0 0.0
        %1016 = vmatprep.subr.mxu0 0.0
        %1017 = vmatpush1.msra.mxu0 0.0
        %1018 = vmatprep.subr.mxu0 0.0
        %1019 = vmatpush1.msra.mxu0 0.0
        %1020 = vmatprep.subr.mxu0 0.0
        %1021 = vmatpush1.msra.mxu0 0.0
        %1022 = vmatprep.subr.mxu0 0.0
        %1023 = vmatpush1.msra.mxu0 0.0
        %1024 = vmatprep.subr.mxu0 0.0
        %1025 = vmatpush1.msra.mxu0 0.0
        %1026 = vmatprep.subr.mxu0 0.0
        %1027 = vmatpush1.msra.mxu0 0.0
        %1028 = vmatprep.subr.mxu0 0.0
        %1029 = vmatpush1.msra.mxu0 0.0
        %1030 = vmatprep.subr.mxu0 0.0
        %1031 = vmatpush1.msra.mxu0 0.0
        %1032 = vmatprep.subr.mxu0 0.0
        %1033 = vmatpush1.msra.mxu0 0.0
        %1034 = vmatprep.subr.mxu0 0.0
        %1035 = vmatpush1.msra.mxu0 0.0
        %1036 = vmatprep.mubr.f32.mxu0 0.0
        %1037 = vmatmul.mubr.f32.gmra.mrb[0].mxu0 %v554
        %v1038 = vpop.f32.mrb[0].mxu0
        %v1039 = vadd.f32 %v970, %v1038
        %v1040 = vpop.f32.mrb[0].mxu0
        %1041 = vdwg.mxu0
        %s1042 = scalar_lea.vmem %s5, 32
        %v1043 = vld [vmem:[%s1042] sm:$0xff]
        %v1044 = vld [vmem:[%s1042 + $0x8] sm:$0xff]
        %v1045 = vld [vmem:[%s1042 + $0x10] sm:$0xff]
        %v1046 = vld [vmem:[%s1042 + $0x18] sm:$0xff]
        %s1047 = scalar_lea.vmem %s8, 1
        %v1048 = vld [vmem:[%s1047] sm:$0x1]
        %v1050 = vlaneseq
        %v1051 = vshrl.u32 %v1050, 7
        %v1052 = vsub.s32 0, %v1051
        %v1053 = vrot.slane %v1048, %v1052
        %1055 = vmatprep.subr.mxu0 0.0
        %1056 = vmatpush1.msra.mxu0 %v1043
        %1057 = vmatprep.subr.mxu0 0.0
        %1058 = vmatpush1.msra.mxu0 %v1044
        %1059 = vmatprep.subr.mxu0 0.0
        %1060 = vmatpush1.msra.mxu0 %v1045
        %1061 = vmatprep.subr.mxu0 0.0
        %1062 = vmatpush1.msra.mxu0 %v1046
        %1063 = vmatprep.subr.mxu0 0.0
        %1064 = vmatpush1.msra.mxu0 0.0
        %1065 = vmatprep.subr.mxu0 0.0
        %1066 = vmatpush1.msra.mxu0 0.0
        %1067 = vmatprep.subr.mxu0 0.0
        %1068 = vmatpush1.msra.mxu0 0.0
        %1069 = vmatprep.subr.mxu0 0.0
        %1070 = vmatpush1.msra.mxu0 0.0
        %1071 = vmatprep.subr.mxu0 0.0
        %1072 = vmatpush1.msra.mxu0 0.0
        %1073 = vmatprep.subr.mxu0 0.0
        %1074 = vmatpush1.msra.mxu0 0.0
        %1075 = vmatprep.subr.mxu0 0.0
        %1076 = vmatpush1.msra.mxu0 0.0
        %1077 = vmatprep.subr.mxu0 0.0
        %1078 = vmatpush1.msra.mxu0 0.0
        %1079 = vmatprep.subr.mxu0 0.0
        %1080 = vmatpush1.msra.mxu0 0.0
        %1081 = vmatprep.subr.mxu0 0.0
        %1082 = vmatpush1.msra.mxu0 0.0
        %1083 = vmatprep.subr.mxu0 0.0
        %1084 = vmatpush1.msra.mxu0 0.0
        %1085 = vmatprep.subr.mxu0 0.0
        %1086 = vmatpush1.msra.mxu0 0.0
        %1087 = vmatprep.subr.mxu0 0.0
        %1088 = vmatpush1.msra.mxu0 0.0
        %1089 = vmatprep.subr.mxu0 0.0
        %1090 = vmatpush1.msra.mxu0 0.0
        %1091 = vmatprep.subr.mxu0 0.0
        %1092 = vmatpush1.msra.mxu0 0.0
        %1093 = vmatprep.subr.mxu0 0.0
        %1094 = vmatpush1.msra.mxu0 0.0
        %1095 = vmatprep.subr.mxu0 0.0
        %1096 = vmatpush1.msra.mxu0 0.0
        %1097 = vmatprep.subr.mxu0 0.0
        %1098 = vmatpush1.msra.mxu0 0.0
        %1099 = vmatprep.subr.mxu0 0.0
        %1100 = vmatpush1.msra.mxu0 0.0
        %1101 = vmatprep.subr.mxu0 0.0
        %1102 = vmatpush1.msra.mxu0 0.0
        %1103 = vmatprep.subr.mxu0 0.0
        %1104 = vmatpush1.msra.mxu0 0.0
        %1105 = vmatprep.subr.mxu0 0.0
        %1106 = vmatpush1.msra.mxu0 0.0
        %1107 = vmatprep.subr.mxu0 0.0
        %1108 = vmatpush1.msra.mxu0 0.0
        %1109 = vmatprep.subr.mxu0 0.0
        %1110 = vmatpush1.msra.mxu0 0.0
        %1111 = vmatprep.subr.mxu0 0.0
        %1112 = vmatpush1.msra.mxu0 0.0
        %1113 = vmatprep.subr.mxu0 0.0
        %1114 = vmatpush1.msra.mxu0 0.0
        %1115 = vmatprep.subr.mxu0 0.0
        %1116 = vmatpush1.msra.mxu0 0.0
        %1117 = vmatprep.subr.mxu0 0.0
        %1118 = vmatpush1.msra.mxu0 0.0
        %1119 = vmatprep.mubr.f32.mxu0 0.0
        %1120 = vmatmul.mubr.f32.gmra.mrb[0].mxu0 %v638
        %v1121 = vpop.f32.mrb[0].mxu0
        %v1122 = vadd.f32 %v1053, %v1121
        %v1123 = vpop.f32.mrb[0].mxu0
        %1124 = vdwg.mxu0
        %v1126 = vsel %vm710, %v956, 0
        %v1129 = vsel %vm710, %v1039, 0
        %1131 = vmatprep.subr.mxu0 0.0
        %1132 = vmatpush1.xpose.msra.mxu0 %v1129
        %1133 = vmatprep.subr.mxu0 0.0
        %1134 = vmatpush1.xpose.msra.mxu0 0.0
        %1135 = vmatprep.subr.mxu0 0.0
        %1136 = vmatpush1.xpose.msra.mxu0 0.0
        %1137 = vmatprep.subr.mxu0 0.0
        %1138 = vmatpush1.xpose.msra.mxu0 0.0
        %1139 = vmatprep.subr.mxu0 0.0
        %1140 = vmatpush1.xpose.msra.mxu0 0.0
        %1141 = vmatprep.subr.mxu0 0.0
        %1142 = vmatpush1.xpose.msra.mxu0 0.0
        %1143 = vmatprep.subr.mxu0 0.0
        %1144 = vmatpush1.xpose.msra.mxu0 0.0
        %1145 = vmatprep.subr.mxu0 0.0
        %1146 = vmatpush1.xpose.msra.mxu0 0.0
        %1147 = vmatprep.subr.mxu0 0.0
        %1148 = vmatpush1.xpose.msra.mxu0 0.0
        %1149 = vmatprep.subr.mxu0 0.0
        %1150 = vmatpush1.xpose.msra.mxu0 0.0
        %1151 = vmatprep.subr.mxu0 0.0
        %1152 = vmatpush1.xpose.msra.mxu0 0.0
        %1153 = vmatprep.subr.mxu0 0.0
        %1154 = vmatpush1.xpose.msra.mxu0 0.0
        %1155 = vmatprep.subr.mxu0 0.0
        %1156 = vmatpush1.xpose.msra.mxu0 0.0
        %1157 = vmatprep.subr.mxu0 0.0
        %1158 = vmatpush1.xpose.msra.mxu0 0.0
        %1159 = vmatprep.subr.mxu0 0.0
        %1160 = vmatpush1.xpose.msra.mxu0 0.0
        %1161 = vmatprep.subr.mxu0 0.0
        %1162 = vmatpush1.xpose.msra.mxu0 0.0
        %1163 = vmatprep.subr.mxu0 0.0
        %1164 = vmatpush1.xpose.msra.mxu0 0.0
        %1165 = vmatprep.subr.mxu0 0.0
        %1166 = vmatpush1.xpose.msra.mxu0 0.0
        %1167 = vmatprep.subr.mxu0 0.0
        %1168 = vmatpush1.xpose.msra.mxu0 0.0
        %1169 = vmatprep.subr.mxu0 0.0
        %1170 = vmatpush1.xpose.msra.mxu0 0.0
        %1171 = vmatprep.subr.mxu0 0.0
        %1172 = vmatpush1.xpose.msra.mxu0 0.0
        %1173 = vmatprep.subr.mxu0 0.0
        %1174 = vmatpush1.xpose.msra.mxu0 0.0
        %1175 = vmatprep.subr.mxu0 0.0
        %1176 = vmatpush1.xpose.msra.mxu0 0.0
        %1177 = vmatprep.subr.mxu0 0.0
        %1178 = vmatpush1.xpose.msra.mxu0 0.0
        %1179 = vmatprep.subr.mxu0 0.0
        %1180 = vmatpush1.xpose.msra.mxu0 0.0
        %1181 = vmatprep.subr.mxu0 0.0
        %1182 = vmatpush1.xpose.msra.mxu0 0.0
        %1183 = vmatprep.subr.mxu0 0.0
        %1184 = vmatpush1.xpose.msra.mxu0 0.0
        %1185 = vmatprep.subr.mxu0 0.0
        %1186 = vmatpush1.xpose.msra.mxu0 0.0
        %1187 = vmatprep.subr.mxu0 0.0
        %1188 = vmatpush1.xpose.msra.mxu0 0.0
        %1189 = vmatprep.subr.mxu0 0.0
        %1190 = vmatpush1.xpose.msra.mxu0 0.0
        %1191 = vmatprep.subr.mxu0 0.0
        %1192 = vmatpush1.xpose.msra.mxu0 0.0
        %1193 = vmatprep.subr.mxu0 0.0
        %1194 = vmatpush1.xpose.msra.mxu0 0.0
        %1195 = vmatprep.mubr.f32.mxu0 0.0
        %1196 = vmatmul.mubr.f32.gmra.mrb[0].mxu0 %v1126
        %v1197 = vpop.f32.mrb[0].mxu0
        %v1198 = vadd.f32 0.0, %v1197
        %v1199 = vpop.f32.mrb[0].mxu0
        %1200 = vdwg.mxu0
        %v1201 = vsel %vm710, %v1198, -inf
        %1202 = vmax.xlane.f32.xlu0 %v1201
        %v1203 = vpop.xlane.xlu0 %1202
        %v1204 = vsub.f32 %v1198, %v1203
        %v1205 = vmul.f32 %v1204, 1.442695
        %v1206 = vpow.pop %v1205
        %v1207 = vsel %vm710, %v1206, 0.0
        %1208 = vadd.xlane.f32.xlu0 %v1207
        %v1209 = vpop.xlane.xlu0 %1208
        %v1210 = vrcp.pop %v1209
        %v1211 = vmul.f32 %v1209, %v1210
        %v1212 = vsub.f32 2.0, %v1211
        %v1213 = vmul.f32 %v1210, %v1212
        %v1214 = vmul.f32 %v1206, %v1213
        %s1215 = scalar_lea.vmem %s441, 8 [#allocation4]
        %1216 = vst.msk [vmem:[%s1215] sm:$0xff] %vm710, %v1214
        %v1218 = vsel %vm710, %v1214, 0
        %1220 = vmatprep.subr.mxu0 0.0
        %1221 = vmatpush1.msra.mxu0 %v1122
        %1222 = vmatprep.subr.mxu0 0.0
        %1223 = vmatpush1.msra.mxu0 0.0
        %1224 = vmatprep.subr.mxu0 0.0
        %1225 = vmatpush1.msra.mxu0 0.0
        %1226 = vmatprep.subr.mxu0 0.0
        %1227 = vmatpush1.msra.mxu0 0.0
        %1228 = vmatprep.subr.mxu0 0.0
        %1229 = vmatpush1.msra.mxu0 0.0
        %1230 = vmatprep.subr.mxu0 0.0
        %1231 = vmatpush1.msra.mxu0 0.0
        %1232 = vmatprep.subr.mxu0 0.0
        %1233 = vmatpush1.msra.mxu0 0.0
        %1234 = vmatprep.subr.mxu0 0.0
        %1235 = vmatpush1.msra.mxu0 0.0
        %1236 = vmatprep.subr.mxu0 0.0
        %1237 = vmatpush1.msra.mxu0 0.0
        %1238 = vmatprep.subr.mxu0 0.0
        %1239 = vmatpush1.msra.mxu0 0.0
        %1240 = vmatprep.subr.mxu0 0.0
        %1241 = vmatpush1.msra.mxu0 0.0
        %1242 = vmatprep.subr.mxu0 0.0
        %1243 = vmatpush1.msra.mxu0 0.0
        %1244 = vmatprep.subr.mxu0 0.0
        %1245 = vmatpush1.msra.mxu0 0.0
        %1246 = vmatprep.subr.mxu0 0.0
        %1247 = vmatpush1.msra.mxu0 0.0
        %1248 = vmatprep.subr.mxu0 0.0
        %1249 = vmatpush1.msra.mxu0 0.0
        %1250 = vmatprep.subr.mxu0 0.0
        %1251 = vmatpush1.msra.mxu0 0.0
        %1252 = vmatprep.subr.mxu0 0.0
        %1253 = vmatpush1.msra.mxu0 0.0
        %1254 = vmatprep.subr.mxu0 0.0
        %1255 = vmatpush1.msra.mxu0 0.0
        %1256 = vmatprep.subr.mxu0 0.0
        %1257 = vmatpush1.msra.mxu0 0.0
        %1258 = vmatprep.subr.mxu0 0.0
        %1259 = vmatpush1.msra.mxu0 0.0
        %1260 = vmatprep.subr.mxu0 0.0
        %1261 = vmatpush1.msra.mxu0 0.0
        %1262 = vmatprep.subr.mxu0 0.0
        %1263 = vmatpush1.msra.mxu0 0.0
        %1264 = vmatprep.subr.mxu0 0.0
        %1265 = vmatpush1.msra.mxu0 0.0
        %1266 = vmatprep.subr.mxu0 0.0
        %1267 = vmatpush1.msra.mxu0 0.0
        %1268 = vmatprep.subr.mxu0 0.0
        %1269 = vmatpush1.msra.mxu0 0.0
        %1270 = vmatprep.subr.mxu0 0.0
        %1271 = vmatpush1.msra.mxu0 0.0
        %1272 = vmatprep.subr.mxu0 0.0
        %1273 = vmatpush1.msra.mxu0 0.0
        %1274 = vmatprep.subr.mxu0 0.0
        %1275 = vmatpush1.msra.mxu0 0.0
        %1276 = vmatprep.subr.mxu0 0.0
        %1277 = vmatpush1.msra.mxu0 0.0
        %1278 = vmatprep.subr.mxu0 0.0
        %1279 = vmatpush1.msra.mxu0 0.0
        %1280 = vmatprep.subr.mxu0 0.0
        %1281 = vmatpush1.msra.mxu0 0.0
        %1282 = vmatprep.subr.mxu0 0.0
        %1283 = vmatpush1.msra.mxu0 0.0
        %1284 = vmatprep.mubr.f32.mxu0 0.0
        %1285 = vmatmul.mubr.f32.gmra.mrb[0].mxu0 %v1218
        %v1286 = vpop.f32.mrb[0].mxu0
        %v1287 = vadd.f32 0.0, %v1286
        %v1288 = vpop.f32.mrb[0].mxu0
        %1289 = vdwg.mxu0
        %s1290 = scalar_lea.vmem %s9, 8
        %v1291 = vld [vmem:[%s1290] sm:$0xff]
        %v1293 = vsel %vm710, %v1287, 0
        %1295 = vmatprep.subr.mxu0 0.0
        %1296 = vmatpush1.msra.mxu0 %v1291
        %1297 = vmatprep.subr.mxu0 0.0
        %1298 = vmatpush1.msra.mxu0 0.0
        %1299 = vmatprep.subr.mxu0 0.0
        %1300 = vmatpush1.msra.mxu0 0.0
        %1301 = vmatprep.subr.mxu0 0.0
        %1302 = vmatpush1.msra.mxu0 0.0
        %1303 = vmatprep.subr.mxu0 0.0
        %1304 = vmatpush1.msra.mxu0 0.0
        %1305 = vmatprep.subr.mxu0 0.0
        %1306 = vmatpush1.msra.mxu0 0.0
        %1307 = vmatprep.subr.mxu0 0.0
        %1308 = vmatpush1.msra.mxu0 0.0
        %1309 = vmatprep.subr.mxu0 0.0
        %1310 = vmatpush1.msra.mxu0 0.0
        %1311 = vmatprep.subr.mxu0 0.0
        %1312 = vmatpush1.msra.mxu0 0.0
        %1313 = vmatprep.subr.mxu0 0.0
        %1314 = vmatpush1.msra.mxu0 0.0
        %1315 = vmatprep.subr.mxu0 0.0
        %1316 = vmatpush1.msra.mxu0 0.0
        %1317 = vmatprep.subr.mxu0 0.0
        %1318 = vmatpush1.msra.mxu0 0.0
        %1319 = vmatprep.subr.mxu0 0.0
        %1320 = vmatpush1.msra.mxu0 0.0
        %1321 = vmatprep.subr.mxu0 0.0
        %1322 = vmatpush1.msra.mxu0 0.0
        %1323 = vmatprep.subr.mxu0 0.0
        %1324 = vmatpush1.msra.mxu0 0.0
        %1325 = vmatprep.subr.mxu0 0.0
        %1326 = vmatpush1.msra.mxu0 0.0
        %1327 = vmatprep.subr.mxu0 0.0
        %1328 = vmatpush1.msra.mxu0 0.0
        %1329 = vmatprep.subr.mxu0 0.0
        %1330 = vmatpush1.msra.mxu0 0.0
        %1331 = vmatprep.subr.mxu0 0.0
        %1332 = vmatpush1.msra.mxu0 0.0
        %1333 = vmatprep.subr.mxu0 0.0
        %1334 = vmatpush1.msra.mxu0 0.0
        %1335 = vmatprep.subr.mxu0 0.0
        %1336 = vmatpush1.msra.mxu0 0.0
        %1337 = vmatprep.subr.mxu0 0.0
        %1338 = vmatpush1.msra.mxu0 0.0
        %1339 = vmatprep.subr.mxu0 0.0
        %1340 = vmatpush1.msra.mxu0 0.0
        %1341 = vmatprep.subr.mxu0 0.0
        %1342 = vmatpush1.msra.mxu0 0.0
        %1343 = vmatprep.subr.mxu0 0.0
        %1344 = vmatpush1.msra.mxu0 0.0
        %1345 = vmatprep.subr.mxu0 0.0
        %1346 = vmatpush1.msra.mxu0 0.0
        %1347 = vmatprep.subr.mxu0 0.0
        %1348 = vmatpush1.msra.mxu0 0.0
        %1349 = vmatprep.subr.mxu0 0.0
        %1350 = vmatpush1.msra.mxu0 0.0
        %1351 = vmatprep.subr.mxu0 0.0
        %1352 = vmatpush1.msra.mxu0 0.0
        %1353 = vmatprep.subr.mxu0 0.0
        %1354 = vmatpush1.msra.mxu0 0.0
        %1355 = vmatprep.subr.mxu0 0.0
        %1356 = vmatpush1.msra.mxu0 0.0
        %1357 = vmatprep.subr.mxu0 0.0
        %1358 = vmatpush1.msra.mxu0 0.0
        %1359 = vmatprep.mubr.f32.mxu0 0.0
        %1360 = vmatmul.mubr.f32.gmra.mrb[0].mxu0 %v1293
        %v1361 = vpop.f32.mrb[0].mxu0
        %v1362 = vadd.f32 0.0, %v1361
        %v1363 = vpop.f32.mrb[0].mxu0
        %1364 = vdwg.mxu0
        %v1366 = vsel %vm710, %v872, 0
        %1368 = vmatprep.subr.mxu0 0.0
        %1369 = vmatpush1.msra.mxu0 %v875
        %1370 = vmatprep.subr.mxu0 0.0
        %1371 = vmatpush1.msra.mxu0 0.0
        %1372 = vmatprep.subr.mxu0 0.0
        %1373 = vmatpush1.msra.mxu0 0.0
        %1374 = vmatprep.subr.mxu0 0.0
        %1375 = vmatpush1.msra.mxu0 0.0
        %1376 = vmatprep.subr.mxu0 0.0
        %1377 = vmatpush1.msra.mxu0 0.0
        %1378 = vmatprep.subr.mxu0 0.0
        %1379 = vmatpush1.msra.mxu0 0.0
        %1380 = vmatprep.subr.mxu0 0.0
        %1381 = vmatpush1.msra.mxu0 0.0
        %1382 = vmatprep.subr.mxu0 0.0
        %1383 = vmatpush1.msra.mxu0 0.0
        %1384 = vmatprep.subr.mxu0 0.0
        %1385 = vmatpush1.msra.mxu0 0.0
        %1386 = vmatprep.subr.mxu0 0.0
        %1387 = vmatpush1.msra.mxu0 0.0
        %1388 = vmatprep.subr.mxu0 0.0
        %1389 = vmatpush1.msra.mxu0 0.0
        %1390 = vmatprep.subr.mxu0 0.0
        %1391 = vmatpush1.msra.mxu0 0.0
        %1392 = vmatprep.subr.mxu0 0.0
        %1393 = vmatpush1.msra.mxu0 0.0
        %1394 = vmatprep.subr.mxu0 0.0
        %1395 = vmatpush1.msra.mxu0 0.0
        %1396 = vmatprep.subr.mxu0 0.0
        %1397 = vmatpush1.msra.mxu0 0.0
        %1398 = vmatprep.subr.mxu0 0.0
        %1399 = vmatpush1.msra.mxu0 0.0
        %1400 = vmatprep.subr.mxu0 0.0
        %1401 = vmatpush1.msra.mxu0 0.0
        %1402 = vmatprep.subr.mxu0 0.0
        %1403 = vmatpush1.msra.mxu0 0.0
        %1404 = vmatprep.subr.mxu0 0.0
        %1405 = vmatpush1.msra.mxu0 0.0
        %1406 = vmatprep.subr.mxu0 0.0
        %1407 = vmatpush1.msra.mxu0 0.0
        %1408 = vmatprep.subr.mxu0 0.0
        %1409 = vmatpush1.msra.mxu0 0.0
        %1410 = vmatprep.subr.mxu0 0.0
        %1411 = vmatpush1.msra.mxu0 0.0
        %1412 = vmatprep.subr.mxu0 0.0
        %1413 = vmatpush1.msra.mxu0 0.0
        %1414 = vmatprep.subr.mxu0 0.0
        %1415 = vmatpush1.msra.mxu0 0.0
        %1416 = vmatprep.subr.mxu0 0.0
        %1417 = vmatpush1.msra.mxu0 0.0
        %1418 = vmatprep.subr.mxu0 0.0
        %1419 = vmatpush1.msra.mxu0 0.0
        %1420 = vmatprep.subr.mxu0 0.0
        %1421 = vmatpush1.msra.mxu0 0.0
        %1422 = vmatprep.subr.mxu0 0.0
        %1423 = vmatpush1.msra.mxu0 0.0
        %1424 = vmatprep.subr.mxu0 0.0
        %1425 = vmatpush1.msra.mxu0 0.0
        %1426 = vmatprep.subr.mxu0 0.0
        %1427 = vmatpush1.msra.mxu0 0.0
        %1428 = vmatprep.subr.mxu0 0.0
        %1429 = vmatpush1.msra.mxu0 0.0
        %1430 = vmatprep.subr.mxu0 0.0
        %1431 = vmatpush1.msra.mxu0 0.0
        %1432 = vmatprep.mubr.f32.mxu0 0.0
        %1433 = vmatmul.mubr.f32.gmra.mrb[0].mxu0 %v1366
        %v1434 = vpop.f32.mrb[0].mxu0
        %v1435 = vadd.f32 %v1362, %v1434
        %v1436 = vpop.f32.mrb[0].mxu0
        %1437 = vdwg.mxu0
        %s1438 = scalar_lea.vmem %s3, 64
        %v1439 = vld [vmem:[%s1438] sm:$0xff]
        %v1440 = vld [vmem:[%s1438 + $0x8] sm:$0xff]
        %v1441 = vld [vmem:[%s1438 + $0x10] sm:$0xff]
        %v1442 = vld [vmem:[%s1438 + $0x18] sm:$0xff]
        %s1443 = scalar_lea.vmem %s6, 2
        %v1444 = vld [vmem:[%s1443] sm:$0x1]
        %v1446 = vlaneseq
        %v1447 = vshrl.u32 %v1446, 7
        %v1448 = vsub.s32 0, %v1447
        %v1449 = vrot.slane %v1444, %v1448
        %1451 = vmatprep.subr.mxu0 0.0
        %1452 = vmatpush1.msra.mxu0 %v1439
        %1453 = vmatprep.subr.mxu0 0.0
        %1454 = vmatpush1.msra.mxu0 %v1440
        %1455 = vmatprep.subr.mxu0 0.0
        %1456 = vmatpush1.msra.mxu0 %v1441
        %1457 = vmatprep.subr.mxu0 0.0
        %1458 = vmatpush1.msra.mxu0 %v1442
        %1459 = vmatprep.subr.mxu0 0.0
        %1460 = vmatpush1.msra.mxu0 0.0
        %1461 = vmatprep.subr.mxu0 0.0
        %1462 = vmatpush1.msra.mxu0 0.0
        %1463 = vmatprep.subr.mxu0 0.0
        %1464 = vmatpush1.msra.mxu0 0.0
        %1465 = vmatprep.subr.mxu0 0.0
        %1466 = vmatpush1.msra.mxu0 0.0
        %1467 = vmatprep.subr.mxu0 0.0
        %1468 = vmatpush1.msra.mxu0 0.0
        %1469 = vmatprep.subr.mxu0 0.0
        %1470 = vmatpush1.msra.mxu0 0.0
        %1471 = vmatprep.subr.mxu0 0.0
        %1472 = vmatpush1.msra.mxu0 0.0
        %1473 = vmatprep.subr.mxu0 0.0
        %1474 = vmatpush1.msra.mxu0 0.0
        %1475 = vmatprep.subr.mxu0 0.0
        %1476 = vmatpush1.msra.mxu0 0.0
        %1477 = vmatprep.subr.mxu0 0.0
        %1478 = vmatpush1.msra.mxu0 0.0
        %1479 = vmatprep.subr.mxu0 0.0
        %1480 = vmatpush1.msra.mxu0 0.0
        %1481 = vmatprep.subr.mxu0 0.0
        %1482 = vmatpush1.msra.mxu0 0.0
        %1483 = vmatprep.subr.mxu0 0.0
        %1484 = vmatpush1.msra.mxu0 0.0
        %1485 = vmatprep.subr.mxu0 0.0
        %1486 = vmatpush1.msra.mxu0 0.0
        %1487 = vmatprep.subr.mxu0 0.0
        %1488 = vmatpush1.msra.mxu0 0.0
        %1489 = vmatprep.subr.mxu0 0.0
        %1490 = vmatpush1.msra.mxu0 0.0
        %1491 = vmatprep.subr.mxu0 0.0
        %1492 = vmatpush1.msra.mxu0 0.0
        %1493 = vmatprep.subr.mxu0 0.0
        %1494 = vmatpush1.msra.mxu0 0.0
        %1495 = vmatprep.subr.mxu0 0.0
        %1496 = vmatpush1.msra.mxu0 0.0
        %1497 = vmatprep.subr.mxu0 0.0
        %1498 = vmatpush1.msra.mxu0 0.0
        %1499 = vmatprep.subr.mxu0 0.0
        %1500 = vmatpush1.msra.mxu0 0.0
        %1501 = vmatprep.subr.mxu0 0.0
        %1502 = vmatpush1.msra.mxu0 0.0
        %1503 = vmatprep.subr.mxu0 0.0
        %1504 = vmatpush1.msra.mxu0 0.0
        %1505 = vmatprep.subr.mxu0 0.0
        %1506 = vmatpush1.msra.mxu0 0.0
        %1507 = vmatprep.subr.mxu0 0.0
        %1508 = vmatpush1.msra.mxu0 0.0
        %1509 = vmatprep.subr.mxu0 0.0
        %1510 = vmatpush1.msra.mxu0 0.0
        %1511 = vmatprep.subr.mxu0 0.0
        %1512 = vmatpush1.msra.mxu0 0.0
        %1513 = vmatprep.subr.mxu0 0.0
        %1514 = vmatpush1.msra.mxu0 0.0
        %1515 = vmatprep.mubr.f32.mxu0 0.0
        %1516 = vmatmul.mubr.f32.gmra.mrb[0].mxu0 %v470
        %v1517 = vpop.f32.mrb[0].mxu0
        %v1518 = vadd.f32 %v1449, %v1517
        %v1519 = vpop.f32.mrb[0].mxu0
        %1520 = vdwg.mxu0
        %s1521 = scalar_lea.vmem %s4, 64
        %v1522 = vld [vmem:[%s1521] sm:$0xff]
        %v1523 = vld [vmem:[%s1521 + $0x8] sm:$0xff]
        %v1524 = vld [vmem:[%s1521 + $0x10] sm:$0xff]
        %v1525 = vld [vmem:[%s1521 + $0x18] sm:$0xff]
        %s1526 = scalar_lea.vmem %s7, 2
        %v1527 = vld [vmem:[%s1526] sm:$0x1]
        %v1529 = vlaneseq
        %v1530 = vshrl.u32 %v1529, 7
        %v1531 = vsub.s32 0, %v1530
        %v1532 = vrot.slane %v1527, %v1531
        %1534 = vmatprep.subr.mxu0 0.0
        %1535 = vmatpush1.msra.mxu0 %v1522
        %1536 = vmatprep.subr.mxu0 0.0
        %1537 = vmatpush1.msra.mxu0 %v1523
        %1538 = vmatprep.subr.mxu0 0.0
        %1539 = vmatpush1.msra.mxu0 %v1524
        %1540 = vmatprep.subr.mxu0 0.0
        %1541 = vmatpush1.msra.mxu0 %v1525
        %1542 = vmatprep.subr.mxu0 0.0
        %1543 = vmatpush1.msra.mxu0 0.0
        %1544 = vmatprep.subr.mxu0 0.0
        %1545 = vmatpush1.msra.mxu0 0.0
        %1546 = vmatprep.subr.mxu0 0.0
        %1547 = vmatpush1.msra.mxu0 0.0
        %1548 = vmatprep.subr.mxu0 0.0
        %1549 = vmatpush1.msra.mxu0 0.0
        %1550 = vmatprep.subr.mxu0 0.0
        %1551 = vmatpush1.msra.mxu0 0.0
        %1552 = vmatprep.subr.mxu0 0.0
        %1553 = vmatpush1.msra.mxu0 0.0
        %1554 = vmatprep.subr.mxu0 0.0
        %1555 = vmatpush1.msra.mxu0 0.0
        %1556 = vmatprep.subr.mxu0 0.0
        %1557 = vmatpush1.msra.mxu0 0.0
        %1558 = vmatprep.subr.mxu0 0.0
        %1559 = vmatpush1.msra.mxu0 0.0
        %1560 = vmatprep.subr.mxu0 0.0
        %1561 = vmatpush1.msra.mxu0 0.0
        %1562 = vmatprep.subr.mxu0 0.0
        %1563 = vmatpush1.msra.mxu0 0.0
        %1564 = vmatprep.subr.mxu0 0.0
        %1565 = vmatpush1.msra.mxu0 0.0
        %1566 = vmatprep.subr.mxu0 0.0
        %1567 = vmatpush1.msra.mxu0 0.0
        %1568 = vmatprep.subr.mxu0 0.0
        %1569 = vmatpush1.msra.mxu0 0.0
        %1570 = vmatprep.subr.mxu0 0.0
        %1571 = vmatpush1.msra.mxu0 0.0
        %1572 = vmatprep.subr.mxu0 0.0
        %1573 = vmatpush1.msra.mxu0 0.0
        %1574 = vmatprep.subr.mxu0 0.0
        %1575 = vmatpush1.msra.mxu0 0.0
        %1576 = vmatprep.subr.mxu0 0.0
        %1577 = vmatpush1.msra.mxu0 0.0
        %1578 = vmatprep.subr.mxu0 0.0
        %1579 = vmatpush1.msra.mxu0 0.0
        %1580 = vmatprep.subr.mxu0 0.0
        %1581 = vmatpush1.msra.mxu0 0.0
        %1582 = vmatprep.subr.mxu0 0.0
        %1583 = vmatpush1.msra.mxu0 0.0
        %1584 = vmatprep.subr.mxu0 0.0
        %1585 = vmatpush1.msra.mxu0 0.0
        %1586 = vmatprep.subr.mxu0 0.0
        %1587 = vmatpush1.msra.mxu0 0.0
        %1588 = vmatprep.subr.mxu0 0.0
        %1589 = vmatpush1.msra.mxu0 0.0
        %1590 = vmatprep.subr.mxu0 0.0
        %1591 = vmatpush1.msra.mxu0 0.0
        %1592 = vmatprep.subr.mxu0 0.0
        %1593 = vmatpush1.msra.mxu0 0.0
        %1594 = vmatprep.subr.mxu0 0.0
        %1595 = vmatpush1.msra.mxu0 0.0
        %1596 = vmatprep.subr.mxu0 0.0
        %1597 = vmatpush1.msra.mxu0 0.0
        %1598 = vmatprep.mubr.f32.mxu0 0.0
        %1599 = vmatmul.mubr.f32.gmra.mrb[0].mxu0 %v554
        %v1600 = vpop.f32.mrb[0].mxu0
        %v1601 = vadd.f32 %v1532, %v1600
        %v1602 = vpop.f32.mrb[0].mxu0
        %1603 = vdwg.mxu0
        %s1604 = scalar_lea.vmem %s5, 64
        %v1605 = vld [vmem:[%s1604] sm:$0xff]
        %v1606 = vld [vmem:[%s1604 + $0x8] sm:$0xff]
        %v1607 = vld [vmem:[%s1604 + $0x10] sm:$0xff]
        %v1608 = vld [vmem:[%s1604 + $0x18] sm:$0xff]
        %s1609 = scalar_lea.vmem %s8, 2
        %v1610 = vld [vmem:[%s1609] sm:$0x1]
        %v1612 = vlaneseq
        %v1613 = vshrl.u32 %v1612, 7
        %v1614 = vsub.s32 0, %v1613
        %v1615 = vrot.slane %v1610, %v1614
        %1617 = vmatprep.subr.mxu0 0.0
        %1618 = vmatpush1.msra.mxu0 %v1605
        %1619 = vmatprep.subr.mxu0 0.0
        %1620 = vmatpush1.msra.mxu0 %v1606
        %1621 = vmatprep.subr.mxu0 0.0
        %1622 = vmatpush1.msra.mxu0 %v1607
        %1623 = vmatprep.subr.mxu0 0.0
        %1624 = vmatpush1.msra.mxu0 %v1608
        %1625 = vmatprep.subr.mxu0 0.0
        %1626 = vmatpush1.msra.mxu0 0.0
        %1627 = vmatprep.subr.mxu0 0.0
        %1628 = vmatpush1.msra.mxu0 0.0
        %1629 = vmatprep.subr.mxu0 0.0
        %1630 = vmatpush1.msra.mxu0 0.0
        %1631 = vmatprep.subr.mxu0 0.0
        %1632 = vmatpush1.msra.mxu0 0.0
        %1633 = vmatprep.subr.mxu0 0.0
        %1634 = vmatpush1.msra.mxu0 0.0
        %1635 = vmatprep.subr.mxu0 0.0
        %1636 = vmatpush1.msra.mxu0 0.0
        %1637 = vmatprep.subr.mxu0 0.0
        %1638 = vmatpush1.msra.mxu0 0.0
        %1639 = vmatprep.subr.mxu0 0.0
        %1640 = vmatpush1.msra.mxu0 0.0
        %1641 = vmatprep.subr.mxu0 0.0
        %1642 = vmatpush1.msra.mxu0 0.0
        %1643 = vmatprep.subr.mxu0 0.0
        %1644 = vmatpush1.msra.mxu0 0.0
        %1645 = vmatprep.subr.mxu0 0.0
        %1646 = vmatpush1.msra.mxu0 0.0
        %1647 = vmatprep.subr.mxu0 0.0
        %1648 = vmatpush1.msra.mxu0 0.0
        %1649 = vmatprep.subr.mxu0 0.0
        %1650 = vmatpush1.msra.mxu0 0.0
        %1651 = vmatprep.subr.mxu0 0.0
        %1652 = vmatpush1.msra.mxu0 0.0
        %1653 = vmatprep.subr.mxu0 0.0
        %1654 = vmatpush1.msra.mxu0 0.0
        %1655 = vmatprep.subr.mxu0 0.0
        %1656 = vmatpush1.msra.mxu0 0.0
        %1657 = vmatprep.subr.mxu0 0.0
        %1658 = vmatpush1.msra.mxu0 0.0
        %1659 = vmatprep.subr.mxu0 0.0
        %1660 = vmatpush1.msra.mxu0 0.0
        %1661 = vmatprep.subr.mxu0 0.0
        %1662 = vmatpush1.msra.mxu0 0.0
        %1663 = vmatprep.subr.mxu0 0.0
        %1664 = vmatpush1.msra.mxu0 0.0
        %1665 = vmatprep.subr.mxu0 0.0
        %1666 = vmatpush1.msra.mxu0 0.0
        %1667 = vmatprep.subr.mxu0 0.0
        %1668 = vmatpush1.msra.mxu0 0.0
        %1669 = vmatprep.subr.mxu0 0.0
        %1670 = vmatpush1.msra.mxu0 0.0
        %1671 = vmatprep.subr.mxu0 0.0
        %1672 = vmatpush1.msra.mxu0 0.0
        %1673 = vmatprep.subr.mxu0 0.0
        %1674 = vmatpush1.msra.mxu0 0.0
        %1675 = vmatprep.subr.mxu0 0.0
        %1676 = vmatpush1.msra.mxu0 0.0
        %1677 = vmatprep.subr.mxu0 0.0
        %1678 = vmatpush1.msra.mxu0 0.0
        %1679 = vmatprep.subr.mxu0 0.0
        %1680 = vmatpush1.msra.mxu0 0.0
        %1681 = vmatprep.mubr.f32.mxu0 0.0
        %1682 = vmatmul.mubr.f32.gmra.mrb[0].mxu0 %v638
        %v1683 = vpop.f32.mrb[0].mxu0
        %v1684 = vadd.f32 %v1615, %v1683
        %v1685 = vpop.f32.mrb[0].mxu0
        %1686 = vdwg.mxu0
        %v1688 = vsel %vm710, %v1518, 0
        %v1691 = vsel %vm710, %v1601, 0
        %1693 = vmatprep.subr.mxu0 0.0
        %1694 = vmatpush1.xpose.msra.mxu0 %v1691
        %1695 = vmatprep.subr.mxu0 0.0
        %1696 = vmatpush1.xpose.msra.mxu0 0.0
        %1697 = vmatprep.subr.mxu0 0.0
        %1698 = vmatpush1.xpose.msra.mxu0 0.0
        %1699 = vmatprep.subr.mxu0 0.0
        %1700 = vmatpush1.xpose.msra.mxu0 0.0
        %1701 = vmatprep.subr.mxu0 0.0
        %1702 = vmatpush1.xpose.msra.mxu0 0.0
        %1703 = vmatprep.subr.mxu0 0.0
        %1704 = vmatpush1.xpose.msra.mxu0 0.0
        %1705 = vmatprep.subr.mxu0 0.0
        %1706 = vmatpush1.xpose.msra.mxu0 0.0
        %1707 = vmatprep.subr.mxu0 0.0
        %1708 = vmatpush1.xpose.msra.mxu0 0.0
        %1709 = vmatprep.subr.mxu0 0.0
        %1710 = vmatpush1.xpose.msra.mxu0 0.0
        %1711 = vmatprep.subr.mxu0 0.0
        %1712 = vmatpush1.xpose.msra.mxu0 0.0
        %1713 = vmatprep.subr.mxu0 0.0
        %1714 = vmatpush1.xpose.msra.mxu0 0.0
        %1715 = vmatprep.subr.mxu0 0.0
        %1716 = vmatpush1.xpose.msra.mxu0 0.0
        %1717 = vmatprep.subr.mxu0 0.0
        %1718 = vmatpush1.xpose.msra.mxu0 0.0
        %1719 = vmatprep.subr.mxu0 0.0
        %1720 = vmatpush1.xpose.msra.mxu0 0.0
        %1721 = vmatprep.subr.mxu0 0.0
        %1722 = vmatpush1.xpose.msra.mxu0 0.0
        %1723 = vmatprep.subr.mxu0 0.0
        %1724 = vmatpush1.xpose.msra.mxu0 0.0
        %1725 = vmatprep.subr.mxu0 0.0
        %1726 = vmatpush1.xpose.msra.mxu0 0.0
        %1727 = vmatprep.subr.mxu0 0.0
        %1728 = vmatpush1.xpose.msra.mxu0 0.0
        %1729 = vmatprep.subr.mxu0 0.0
        %1730 = vmatpush1.xpose.msra.mxu0 0.0
        %1731 = vmatprep.subr.mxu0 0.0
        %1732 = vmatpush1.xpose.msra.mxu0 0.0
        %1733 = vmatprep.subr.mxu0 0.0
        %1734 = vmatpush1.xpose.msra.mxu0 0.0
        %1735 = vmatprep.subr.mxu0 0.0
        %1736 = vmatpush1.xpose.msra.mxu0 0.0
        %1737 = vmatprep.subr.mxu0 0.0
        %1738 = vmatpush1.xpose.msra.mxu0 0.0
        %1739 = vmatprep.subr.mxu0 0.0
        %1740 = vmatpush1.xpose.msra.mxu0 0.0
        %1741 = vmatprep.subr.mxu0 0.0
        %1742 = vmatpush1.xpose.msra.mxu0 0.0
        %1743 = vmatprep.subr.mxu0 0.0
        %1744 = vmatpush1.xpose.msra.mxu0 0.0
        %1745 = vmatprep.subr.mxu0 0.0
        %1746 = vmatpush1.xpose.msra.mxu0 0.0
        %1747 = vmatprep.subr.mxu0 0.0
        %1748 = vmatpush1.xpose.msra.mxu0 0.0
        %1749 = vmatprep.subr.mxu0 0.0
        %1750 = vmatpush1.xpose.msra.mxu0 0.0
        %1751 = vmatprep.subr.mxu0 0.0
        %1752 = vmatpush1.xpose.msra.mxu0 0.0
        %1753 = vmatprep.subr.mxu0 0.0
        %1754 = vmatpush1.xpose.msra.mxu0 0.0
        %1755 = vmatprep.subr.mxu0 0.0
        %1756 = vmatpush1.xpose.msra.mxu0 0.0
        %1757 = vmatprep.mubr.f32.mxu0 0.0
        %1758 = vmatmul.mubr.f32.gmra.mrb[0].mxu0 %v1688
        %v1759 = vpop.f32.mrb[0].mxu0
        %v1760 = vadd.f32 0.0, %v1759
        %v1761 = vpop.f32.mrb[0].mxu0
        %1762 = vdwg.mxu0
        %v1763 = vsel %vm710, %v1760, -inf
        %1764 = vmax.xlane.f32.xlu0 %v1763
        %v1765 = vpop.xlane.xlu0 %1764
        %v1766 = vsub.f32 %v1760, %v1765
        %v1767 = vmul.f32 %v1766, 1.442695
        %v1768 = vpow.pop %v1767
        %v1769 = vsel %vm710, %v1768, 0.0
        %1770 = vadd.xlane.f32.xlu0 %v1769
        %v1771 = vpop.xlane.xlu0 %1770
        %v1772 = vrcp.pop %v1771
        %v1773 = vmul.f32 %v1771, %v1772
        %v1774 = vsub.f32 2.0, %v1773
        %v1775 = vmul.f32 %v1772, %v1774
        %v1776 = vmul.f32 %v1768, %v1775
        %s1777 = scalar_lea.vmem %s441, 16 [#allocation4]
        %1778 = vst.msk [vmem:[%s1777] sm:$0xff] %vm710, %v1776
        %v1780 = vsel %vm710, %v1776, 0
        %1782 = vmatprep.subr.mxu0 0.0
        %1783 = vmatpush1.msra.mxu0 %v1684
        %1784 = vmatprep.subr.mxu0 0.0
        %1785 = vmatpush1.msra.mxu0 0.0
        %1786 = vmatprep.subr.mxu0 0.0
        %1787 = vmatpush1.msra.mxu0 0.0
        %1788 = vmatprep.subr.mxu0 0.0
        %1789 = vmatpush1.msra.mxu0 0.0
        %1790 = vmatprep.subr.mxu0 0.0
        %1791 = vmatpush1.msra.mxu0 0.0
        %1792 = vmatprep.subr.mxu0 0.0
        %1793 = vmatpush1.msra.mxu0 0.0
        %1794 = vmatprep.subr.mxu0 0.0
        %1795 = vmatpush1.msra.mxu0 0.0
        %1796 = vmatprep.subr.mxu0 0.0
        %1797 = vmatpush1.msra.mxu0 0.0
        %1798 = vmatprep.subr.mxu0 0.0
        %1799 = vmatpush1.msra.mxu0 0.0
        %1800 = vmatprep.subr.mxu0 0.0
        %1801 = vmatpush1.msra.mxu0 0.0
        %1802 = vmatprep.subr.mxu0 0.0
        %1803 = vmatpush1.msra.mxu0 0.0
        %1804 = vmatprep.subr.mxu0 0.0
        %1805 = vmatpush1.msra.mxu0 0.0
        %1806 = vmatprep.subr.mxu0 0.0
        %1807 = vmatpush1.msra.mxu0 0.0
        %1808 = vmatprep.subr.mxu0 0.0
        %1809 = vmatpush1.msra.mxu0 0.0
        %1810 = vmatprep.subr.mxu0 0.0
        %1811 = vmatpush1.msra.mxu0 0.0
        %1812 = vmatprep.subr.mxu0 0.0
        %1813 = vmatpush1.msra.mxu0 0.0
        %1814 = vmatprep.subr.mxu0 0.0
        %1815 = vmatpush1.msra.mxu0 0.0
        %1816 = vmatprep.subr.mxu0 0.0
        %1817 = vmatpush1.msra.mxu0 0.0
        %1818 = vmatprep.subr.mxu0 0.0
        %1819 = vmatpush1.msra.mxu0 0.0
        %1820 = vmatprep.subr.mxu0 0.0
        %1821 = vmatpush1.msra.mxu0 0.0
        %1822 = vmatprep.subr.mxu0 0.0
        %1823 = vmatpush1.msra.mxu0 0.0
        %1824 = vmatprep.subr.mxu0 0.0
        %1825 = vmatpush1.msra.mxu0 0.0
        %1826 = vmatprep.subr.mxu0 0.0
        %1827 = vmatpush1.msra.mxu0 0.0
        %1828 = vmatprep.subr.mxu0 0.0
        %1829 = vmatpush1.msra.mxu0 0.0
        %1830 = vmatprep.subr.mxu0 0.0
        %1831 = vmatpush1.msra.mxu0 0.0
        %1832 = vmatprep.subr.mxu0 0.0
        %1833 = vmatpush1.msra.mxu0 0.0
        %1834 = vmatprep.subr.mxu0 0.0
        %1835 = vmatpush1.msra.mxu0 0.0
        %1836 = vmatprep.subr.mxu0 0.0
        %1837 = vmatpush1.msra.mxu0 0.0
        %1838 = vmatprep.subr.mxu0 0.0
        %1839 = vmatpush1.msra.mxu0 0.0
        %1840 = vmatprep.subr.mxu0 0.0
        %1841 = vmatpush1.msra.mxu0 0.0
        %1842 = vmatprep.subr.mxu0 0.0
        %1843 = vmatpush1.msra.mxu0 0.0
        %1844 = vmatprep.subr.mxu0 0.0
        %1845 = vmatpush1.msra.mxu0 0.0
        %1846 = vmatprep.mubr.f32.mxu0 0.0
        %1847 = vmatmul.mubr.f32.gmra.mrb[0].mxu0 %v1780
        %v1848 = vpop.f32.mrb[0].mxu0
        %v1849 = vadd.f32 0.0, %v1848
        %v1850 = vpop.f32.mrb[0].mxu0
        %1851 = vdwg.mxu0
        %s1852 = scalar_lea.vmem %s9, 16
        %v1853 = vld [vmem:[%s1852] sm:$0xff]
        %v1855 = vsel %vm710, %v1849, 0
        %1857 = vmatprep.subr.mxu0 0.0
        %1858 = vmatpush1.msra.mxu0 %v1853
        %1859 = vmatprep.subr.mxu0 0.0
        %1860 = vmatpush1.msra.mxu0 0.0
        %1861 = vmatprep.subr.mxu0 0.0
        %1862 = vmatpush1.msra.mxu0 0.0
        %1863 = vmatprep.subr.mxu0 0.0
        %1864 = vmatpush1.msra.mxu0 0.0
        %1865 = vmatprep.subr.mxu0 0.0
        %1866 = vmatpush1.msra.mxu0 0.0
        %1867 = vmatprep.subr.mxu0 0.0
        %1868 = vmatpush1.msra.mxu0 0.0
        %1869 = vmatprep.subr.mxu0 0.0
        %1870 = vmatpush1.msra.mxu0 0.0
        %1871 = vmatprep.subr.mxu0 0.0
        %1872 = vmatpush1.msra.mxu0 0.0
        %1873 = vmatprep.subr.mxu0 0.0
        %1874 = vmatpush1.msra.mxu0 0.0
        %1875 = vmatprep.subr.mxu0 0.0
        %1876 = vmatpush1.msra.mxu0 0.0
        %1877 = vmatprep.subr.mxu0 0.0
        %1878 = vmatpush1.msra.mxu0 0.0
        %1879 = vmatprep.subr.mxu0 0.0
        %1880 = vmatpush1.msra.mxu0 0.0
        %1881 = vmatprep.subr.mxu0 0.0
        %1882 = vmatpush1.msra.mxu0 0.0
        %1883 = vmatprep.subr.mxu0 0.0
        %1884 = vmatpush1.msra.mxu0 0.0
        %1885 = vmatprep.subr.mxu0 0.0
        %1886 = vmatpush1.msra.mxu0 0.0
        %1887 = vmatprep.subr.mxu0 0.0
        %1888 = vmatpush1.msra.mxu0 0.0
        %1889 = vmatprep.subr.mxu0 0.0
        %1890 = vmatpush1.msra.mxu0 0.0
        %1891 = vmatprep.subr.mxu0 0.0
        %1892 = vmatpush1.msra.mxu0 0.0
        %1893 = vmatprep.subr.mxu0 0.0
        %1894 = vmatpush1.msra.mxu0 0.0
        %1895 = vmatprep.subr.mxu0 0.0
        %1896 = vmatpush1.msra.mxu0 0.0
        %1897 = vmatprep.subr.mxu0 0.0
        %1898 = vmatpush1.msra.mxu0 0.0
        %1899 = vmatprep.subr.mxu0 0.0
        %1900 = vmatpush1.msra.mxu0 0.0
        %1901 = vmatprep.subr.mxu0 0.0
        %1902 = vmatpush1.msra.mxu0 0.0
        %1903 = vmatprep.subr.mxu0 0.0
        %1904 = vmatpush1.msra.mxu0 0.0
        %1905 = vmatprep.subr.mxu0 0.0
        %1906 = vmatpush1.msra.mxu0 0.0
        %1907 = vmatprep.subr.mxu0 0.0
        %1908 = vmatpush1.msra.mxu0 0.0
        %1909 = vmatprep.subr.mxu0 0.0
        %1910 = vmatpush1.msra.mxu0 0.0
        %1911 = vmatprep.subr.mxu0 0.0
        %1912 = vmatpush1.msra.mxu0 0.0
        %1913 = vmatprep.subr.mxu0 0.0
        %1914 = vmatpush1.msra.mxu0 0.0
        %1915 = vmatprep.subr.mxu0 0.0
        %1916 = vmatpush1.msra.mxu0 0.0
        %1917 = vmatprep.subr.mxu0 0.0
        %1918 = vmatpush1.msra.mxu0 0.0
        %1919 = vmatprep.subr.mxu0 0.0
        %1920 = vmatpush1.msra.mxu0 0.0
        %1921 = vmatprep.mubr.f32.mxu0 0.0
        %1922 = vmatmul.mubr.f32.gmra.mrb[0].mxu0 %v1855
        %v1923 = vpop.f32.mrb[0].mxu0
        %v1924 = vadd.f32 0.0, %v1923
        %v1925 = vpop.f32.mrb[0].mxu0
        %1926 = vdwg.mxu0
        %v1927 = vadd.f32 %v1435, %v1924
        %s1928 = scalar_lea.vmem %s3, 96
        %v1929 = vld [vmem:[%s1928] sm:$0xff]
        %v1930 = vld [vmem:[%s1928 + $0x8] sm:$0xff]
        %v1931 = vld [vmem:[%s1928 + $0x10] sm:$0xff]
        %v1932 = vld [vmem:[%s1928 + $0x18] sm:$0xff]
        %s1933 = scalar_lea.vmem %s6, 3
        %v1934 = vld [vmem:[%s1933] sm:$0x1]
        %v1936 = vlaneseq
        %v1937 = vshrl.u32 %v1936, 7
        %v1938 = vsub.s32 0, %v1937
        %v1939 = vrot.slane %v1934, %v1938
        %1941 = vmatprep.subr.mxu0 0.0
        %1942 = vmatpush1.msra.mxu0 %v1929
        %1943 = vmatprep.subr.mxu0 0.0
        %1944 = vmatpush1.msra.mxu0 %v1930
        %1945 = vmatprep.subr.mxu0 0.0
        %1946 = vmatpush1.msra.mxu0 %v1931
        %1947 = vmatprep.subr.mxu0 0.0
        %1948 = vmatpush1.msra.mxu0 %v1932
        %1949 = vmatprep.subr.mxu0 0.0
        %1950 = vmatpush1.msra.mxu0 0.0
        %1951 = vmatprep.subr.mxu0 0.0
        %1952 = vmatpush1.msra.mxu0 0.0
        %1953 = vmatprep.subr.mxu0 0.0
        %1954 = vmatpush1.msra.mxu0 0.0
        %1955 = vmatprep.subr.mxu0 0.0
        %1956 = vmatpush1.msra.mxu0 0.0
        %1957 = vmatprep.subr.mxu0 0.0
        %1958 = vmatpush1.msra.mxu0 0.0
        %1959 = vmatprep.subr.mxu0 0.0
        %1960 = vmatpush1.msra.mxu0 0.0
        %1961 = vmatprep.subr.mxu0 0.0
        %1962 = vmatpush1.msra.mxu0 0.0
        %1963 = vmatprep.subr.mxu0 0.0
        %1964 = vmatpush1.msra.mxu0 0.0
        %1965 = vmatprep.subr.mxu0 0.0
        %1966 = vmatpush1.msra.mxu0 0.0
        %1967 = vmatprep.subr.mxu0 0.0
        %1968 = vmatpush1.msra.mxu0 0.0
        %1969 = vmatprep.subr.mxu0 0.0
        %1970 = vmatpush1.msra.mxu0 0.0
        %1971 = vmatprep.subr.mxu0 0.0
        %1972 = vmatpush1.msra.mxu0 0.0
        %1973 = vmatprep.subr.mxu0 0.0
        %1974 = vmatpush1.msra.mxu0 0.0
        %1975 = vmatprep.subr.mxu0 0.0
        %1976 = vmatpush1.msra.mxu0 0.0
        %1977 = vmatprep.subr.mxu0 0.0
        %1978 = vmatpush1.msra.mxu0 0.0
        %1979 = vmatprep.subr.mxu0 0.0
        %1980 = vmatpush1.msra.mxu0 0.0
        %1981 = vmatprep.subr.mxu0 0.0
        %1982 = vmatpush1.msra.mxu0 0.0
        %1983 = vmatprep.subr.mxu0 0.0
        %1984 = vmatpush1.msra.mxu0 0.0
        %1985 = vmatprep.subr.mxu0 0.0
        %1986 = vmatpush1.msra.mxu0 0.0
        %1987 = vmatprep.subr.mxu0 0.0
        %1988 = vmatpush1.msra.mxu0 0.0
        %1989 = vmatprep.subr.mxu0 0.0
        %1990 = vmatpush1.msra.mxu0 0.0
        %1991 = vmatprep.subr.mxu0 0.0
        %1992 = vmatpush1.msra.mxu0 0.0
        %1993 = vmatprep.subr.mxu0 0.0
        %1994 = vmatpush1.msra.mxu0 0.0
        %1995 = vmatprep.subr.mxu0 0.0
        %1996 = vmatpush1.msra.mxu0 0.0
        %1997 = vmatprep.subr.mxu0 0.0
        %1998 = vmatpush1.msra.mxu0 0.0
        %1999 = vmatprep.subr.mxu0 0.0
        %2000 = vmatpush1.msra.mxu0 0.0
        %2001 = vmatprep.subr.mxu0 0.0
        %2002 = vmatpush1.msra.mxu0 0.0
        %2003 = vmatprep.subr.mxu0 0.0
        %2004 = vmatpush1.msra.mxu0 0.0
        %2005 = vmatprep.mubr.f32.mxu0 0.0
        %2006 = vmatmul.mubr.f32.gmra.mrb[0].mxu0 %v470
        %v2007 = vpop.f32.mrb[0].mxu0
        %v2008 = vadd.f32 %v1939, %v2007
        %v2009 = vpop.f32.mrb[0].mxu0
        %2010 = vdwg.mxu0
        %s2011 = scalar_lea.vmem %s4, 96
        %v2012 = vld [vmem:[%s2011] sm:$0xff]
        %v2013 = vld [vmem:[%s2011 + $0x8] sm:$0xff]
        %v2014 = vld [vmem:[%s2011 + $0x10] sm:$0xff]
        %v2015 = vld [vmem:[%s2011 + $0x18] sm:$0xff]
        %s2016 = scalar_lea.vmem %s7, 3
        %v2017 = vld [vmem:[%s2016] sm:$0x1]
        %v2019 = vlaneseq
        %v2020 = vshrl.u32 %v2019, 7
        %v2021 = vsub.s32 0, %v2020
        %v2022 = vrot.slane %v2017, %v2021
        %2024 = vmatprep.subr.mxu0 0.0
        %2025 = vmatpush1.msra.mxu0 %v2012
        %2026 = vmatprep.subr.mxu0 0.0
        %2027 = vmatpush1.msra.mxu0 %v2013
        %2028 = vmatprep.subr.mxu0 0.0
        %2029 = vmatpush1.msra.mxu0 %v2014
        %2030 = vmatprep.subr.mxu0 0.0
        %2031 = vmatpush1.msra.mxu0 %v2015
        %2032 = vmatprep.subr.mxu0 0.0
        %2033 = vmatpush1.msra.mxu0 0.0
        %2034 = vmatprep.subr.mxu0 0.0
        %2035 = vmatpush1.msra.mxu0 0.0
        %2036 = vmatprep.subr.mxu0 0.0
        %2037 = vmatpush1.msra.mxu0 0.0
        %2038 = vmatprep.subr.mxu0 0.0
        %2039 = vmatpush1.msra.mxu0 0.0
        %2040 = vmatprep.subr.mxu0 0.0
        %2041 = vmatpush1.msra.mxu0 0.0
        %2042 = vmatprep.subr.mxu0 0.0
        %2043 = vmatpush1.msra.mxu0 0.0
        %2044 = vmatprep.subr.mxu0 0.0
        %2045 = vmatpush1.msra.mxu0 0.0
        %2046 = vmatprep.subr.mxu0 0.0
        %2047 = vmatpush1.msra.mxu0 0.0
        %2048 = vmatprep.subr.mxu0 0.0
        %2049 = vmatpush1.msra.mxu0 0.0
        %2050 = vmatprep.subr.mxu0 0.0
        %2051 = vmatpush1.msra.mxu0 0.0
        %2052 = vmatprep.subr.mxu0 0.0
        %2053 = vmatpush1.msra.mxu0 0.0
        %2054 = vmatprep.subr.mxu0 0.0
        %2055 = vmatpush1.msra.mxu0 0.0
        %2056 = vmatprep.subr.mxu0 0.0
        %2057 = vmatpush1.msra.mxu0 0.0
        %2058 = vmatprep.subr.mxu0 0.0
        %2059 = vmatpush1.msra.mxu0 0.0
        %2060 = vmatprep.subr.mxu0 0.0
        %2061 = vmatpush1.msra.mxu0 0.0
        %2062 = vmatprep.subr.mxu0 0.0
        %2063 = vmatpush1.msra.mxu0 0.0
        %2064 = vmatprep.subr.mxu0 0.0
        %2065 = vmatpush1.msra.mxu0 0.0
        %2066 = vmatprep.subr.mxu0 0.0
        %2067 = vmatpush1.msra.mxu0 0.0
        %2068 = vmatprep.subr.mxu0 0.0
        %2069 = vmatpush1.msra.mxu0 0.0
        %2070 = vmatprep.subr.mxu0 0.0
        %2071 = vmatpush1.msra.mxu0 0.0
        %2072 = vmatprep.subr.mxu0 0.0
        %2073 = vmatpush1.msra.mxu0 0.0
        %2074 = vmatprep.subr.mxu0 0.0
        %2075 = vmatpush1.msra.mxu0 0.0
        %2076 = vmatprep.subr.mxu0 0.0
        %2077 = vmatpush1.msra.mxu0 0.0
        %2078 = vmatprep.subr.mxu0 0.0
        %2079 = vmatpush1.msra.mxu0 0.0
        %2080 = vmatprep.subr.mxu0 0.0
        %2081 = vmatpush1.msra.mxu0 0.0
        %2082 = vmatprep.subr.mxu0 0.0
        %2083 = vmatpush1.msra.mxu0 0.0
        %2084 = vmatprep.subr.mxu0 0.0
        %2085 = vmatpush1.msra.mxu0 0.0
        %2086 = vmatprep.subr.mxu0 0.0
        %2087 = vmatpush1.msra.mxu0 0.0
        %2088 = vmatprep.mubr.f32.mxu0 0.0
        %2089 = vmatmul.mubr.f32.gmra.mrb[0].mxu0 %v554
        %v2090 = vpop.f32.mrb[0].mxu0
        %v2091 = vadd.f32 %v2022, %v2090
        %v2092 = vpop.f32.mrb[0].mxu0
        %2093 = vdwg.mxu0
        %s2094 = scalar_lea.vmem %s5, 96
        %v2095 = vld [vmem:[%s2094] sm:$0xff]
        %v2096 = vld [vmem:[%s2094 + $0x8] sm:$0xff]
        %v2097 = vld [vmem:[%s2094 + $0x10] sm:$0xff]
        %v2098 = vld [vmem:[%s2094 + $0x18] sm:$0xff]
        %s2099 = scalar_lea.vmem %s8, 3
        %v2100 = vld [vmem:[%s2099] sm:$0x1]
        %v2102 = vlaneseq
        %v2103 = vshrl.u32 %v2102, 7
        %v2104 = vsub.s32 0, %v2103
        %v2105 = vrot.slane %v2100, %v2104
        %2107 = vmatprep.subr.mxu0 0.0
        %2108 = vmatpush1.msra.mxu0 %v2095
        %2109 = vmatprep.subr.mxu0 0.0
        %2110 = vmatpush1.msra.mxu0 %v2096
        %2111 = vmatprep.subr.mxu0 0.0
        %2112 = vmatpush1.msra.mxu0 %v2097
        %2113 = vmatprep.subr.mxu0 0.0
        %2114 = vmatpush1.msra.mxu0 %v2098
        %2115 = vmatprep.subr.mxu0 0.0
        %2116 = vmatpush1.msra.mxu0 0.0
        %2117 = vmatprep.subr.mxu0 0.0
        %2118 = vmatpush1.msra.mxu0 0.0
        %2119 = vmatprep.subr.mxu0 0.0
        %2120 = vmatpush1.msra.mxu0 0.0
        %2121 = vmatprep.subr.mxu0 0.0
        %2122 = vmatpush1.msra.mxu0 0.0
        %2123 = vmatprep.subr.mxu0 0.0
        %2124 = vmatpush1.msra.mxu0 0.0
        %2125 = vmatprep.subr.mxu0 0.0
        %2126 = vmatpush1.msra.mxu0 0.0
        %2127 = vmatprep.subr.mxu0 0.0
        %2128 = vmatpush1.msra.mxu0 0.0
        %2129 = vmatprep.subr.mxu0 0.0
        %2130 = vmatpush1.msra.mxu0 0.0
        %2131 = vmatprep.subr.mxu0 0.0
        %2132 = vmatpush1.msra.mxu0 0.0
        %2133 = vmatprep.subr.mxu0 0.0
        %2134 = vmatpush1.msra.mxu0 0.0
        %2135 = vmatprep.subr.mxu0 0.0
        %2136 = vmatpush1.msra.mxu0 0.0
        %2137 = vmatprep.subr.mxu0 0.0
        %2138 = vmatpush1.msra.mxu0 0.0
        %2139 = vmatprep.subr.mxu0 0.0
        %2140 = vmatpush1.msra.mxu0 0.0
        %2141 = vmatprep.subr.mxu0 0.0
        %2142 = vmatpush1.msra.mxu0 0.0
        %2143 = vmatprep.subr.mxu0 0.0
        %2144 = vmatpush1.msra.mxu0 0.0
        %2145 = vmatprep.subr.mxu0 0.0
        %2146 = vmatpush1.msra.mxu0 0.0
        %2147 = vmatprep.subr.mxu0 0.0
        %2148 = vmatpush1.msra.mxu0 0.0
        %2149 = vmatprep.subr.mxu0 0.0
        %2150 = vmatpush1.msra.mxu0 0.0
        %2151 = vmatprep.subr.mxu0 0.0
        %2152 = vmatpush1.msra.mxu0 0.0
        %2153 = vmatprep.subr.mxu0 0.0
        %2154 = vmatpush1.msra.mxu0 0.0
        %2155 = vmatprep.subr.mxu0 0.0
        %2156 = vmatpush1.msra.mxu0 0.0
        %2157 = vmatprep.subr.mxu0 0.0
        %2158 = vmatpush1.msra.mxu0 0.0
        %2159 = vmatprep.subr.mxu0 0.0
        %2160 = vmatpush1.msra.mxu0 0.0
        %2161 = vmatprep.subr.mxu0 0.0
        %2162 = vmatpush1.msra.mxu0 0.0
        %2163 = vmatprep.subr.mxu0 0.0
        %2164 = vmatpush1.msra.mxu0 0.0
        %2165 = vmatprep.subr.mxu0 0.0
        %2166 = vmatpush1.msra.mxu0 0.0
        %2167 = vmatprep.subr.mxu0 0.0
        %2168 = vmatpush1.msra.mxu0 0.0
        %2169 = vmatprep.subr.mxu0 0.0
        %2170 = vmatpush1.msra.mxu0 0.0
        %2171 = vmatprep.mubr.f32.mxu0 0.0
        %2172 = vmatmul.mubr.f32.gmra.mrb[0].mxu0 %v638
        %v2173 = vpop.f32.mrb[0].mxu0
        %v2174 = vadd.f32 %v2105, %v2173
        %v2175 = vpop.f32.mrb[0].mxu0
        %2176 = vdwg.mxu0
        %v2178 = vsel %vm710, %v2008, 0
        %v2181 = vsel %vm710, %v2091, 0
        %2183 = vmatprep.subr.mxu0 0.0
        %2184 = vmatpush1.xpose.msra.mxu0 %v2181
        %2185 = vmatprep.subr.mxu0 0.0
        %2186 = vmatpush1.xpose.msra.mxu0 0.0
        %2187 = vmatprep.subr.mxu0 0.0
        %2188 = vmatpush1.xpose.msra.mxu0 0.0
        %2189 = vmatprep.subr.mxu0 0.0
        %2190 = vmatpush1.xpose.msra.mxu0 0.0
        %2191 = vmatprep.subr.mxu0 0.0
        %2192 = vmatpush1.xpose.msra.mxu0 0.0
        %2193 = vmatprep.subr.mxu0 0.0
        %2194 = vmatpush1.xpose.msra.mxu0 0.0
        %2195 = vmatprep.subr.mxu0 0.0
        %2196 = vmatpush1.xpose.msra.mxu0 0.0
        %2197 = vmatprep.subr.mxu0 0.0
        %2198 = vmatpush1.xpose.msra.mxu0 0.0
        %2199 = vmatprep.subr.mxu0 0.0
        %2200 = vmatpush1.xpose.msra.mxu0 0.0
        %2201 = vmatprep.subr.mxu0 0.0
        %2202 = vmatpush1.xpose.msra.mxu0 0.0
        %2203 = vmatprep.subr.mxu0 0.0
        %2204 = vmatpush1.xpose.msra.mxu0 0.0
        %2205 = vmatprep.subr.mxu0 0.0
        %2206 = vmatpush1.xpose.msra.mxu0 0.0
        %2207 = vmatprep.subr.mxu0 0.0
        %2208 = vmatpush1.xpose.msra.mxu0 0.0
        %2209 = vmatprep.subr.mxu0 0.0
        %2210 = vmatpush1.xpose.msra.mxu0 0.0
        %2211 = vmatprep.subr.mxu0 0.0
        %2212 = vmatpush1.xpose.msra.mxu0 0.0
        %2213 = vmatprep.subr.mxu0 0.0
        %2214 = vmatpush1.xpose.msra.mxu0 0.0
        %2215 = vmatprep.subr.mxu0 0.0
        %2216 = vmatpush1.xpose.msra.mxu0 0.0
        %2217 = vmatprep.subr.mxu0 0.0
        %2218 = vmatpush1.xpose.msra.mxu0 0.0
        %2219 = vmatprep.subr.mxu0 0.0
        %2220 = vmatpush1.xpose.msra.mxu0 0.0
        %2221 = vmatprep.subr.mxu0 0.0
        %2222 = vmatpush1.xpose.msra.mxu0 0.0
        %2223 = vmatprep.subr.mxu0 0.0
        %2224 = vmatpush1.xpose.msra.mxu0 0.0
        %2225 = vmatprep.subr.mxu0 0.0
        %2226 = vmatpush1.xpose.msra.mxu0 0.0
        %2227 = vmatprep.subr.mxu0 0.0
        %2228 = vmatpush1.xpose.msra.mxu0 0.0
        %2229 = vmatprep.subr.mxu0 0.0
        %2230 = vmatpush1.xpose.msra.mxu0 0.0
        %2231 = vmatprep.subr.mxu0 0.0
        %2232 = vmatpush1.xpose.msra.mxu0 0.0
        %2233 = vmatprep.subr.mxu0 0.0
        %2234 = vmatpush1.xpose.msra.mxu0 0.0
        %2235 = vmatprep.subr.mxu0 0.0
        %2236 = vmatpush1.xpose.msra.mxu0 0.0
        %2237 = vmatprep.subr.mxu0 0.0
        %2238 = vmatpush1.xpose.msra.mxu0 0.0
        %2239 = vmatprep.subr.mxu0 0.0
        %2240 = vmatpush1.xpose.msra.mxu0 0.0
        %2241 = vmatprep.subr.mxu0 0.0
        %2242 = vmatpush1.xpose.msra.mxu0 0.0
        %2243 = vmatprep.subr.mxu0 0.0
        %2244 = vmatpush1.xpose.msra.mxu0 0.0
        %2245 = vmatprep.subr.mxu0 0.0
        %2246 = vmatpush1.xpose.msra.mxu0 0.0
        %2247 = vmatprep.mubr.f32.mxu0 0.0
        %2248 = vmatmul.mubr.f32.gmra.mrb[0].mxu0 %v2178
        %v2249 = vpop.f32.mrb[0].mxu0
        %v2250 = vadd.f32 0.0, %v2249
        %v2251 = vpop.f32.mrb[0].mxu0
        %2252 = vdwg.mxu0
        %v2253 = vsel %vm710, %v2250, -inf
        %2254 = vmax.xlane.f32.xlu0 %v2253
        %v2255 = vpop.xlane.xlu0 %2254
        %v2256 = vsub.f32 %v2250, %v2255
        %v2257 = vmul.f32 %v2256, 1.442695
        %v2258 = vpow.pop %v2257
        %v2259 = vsel %vm710, %v2258, 0.0
        %2260 = vadd.xlane.f32.xlu0 %v2259
        %v2261 = vpop.xlane.xlu0 %2260
        %v2262 = vrcp.pop %v2261
        %v2263 = vmul.f32 %v2261, %v2262
        %v2264 = vsub.f32 2.0, %v2263
        %v2265 = vmul.f32 %v2262, %v2264
        %v2266 = vmul.f32 %v2258, %v2265
        %s2267 = scalar_lea.vmem %s441, 24 [#allocation4]
        %2268 = vst.msk [vmem:[%s2267] sm:$0xff] %vm710, %v2266
        %v2270 = vsel %vm710, %v2266, 0
        %2272 = vmatprep.subr.mxu0 0.0
        %2273 = vmatpush1.msra.mxu0 %v2174
        %2274 = vmatprep.subr.mxu0 0.0
        %2275 = vmatpush1.msra.mxu0 0.0
        %2276 = vmatprep.subr.mxu0 0.0
        %2277 = vmatpush1.msra.mxu0 0.0
        %2278 = vmatprep.subr.mxu0 0.0
        %2279 = vmatpush1.msra.mxu0 0.0
        %2280 = vmatprep.subr.mxu0 0.0
        %2281 = vmatpush1.msra.mxu0 0.0
        %2282 = vmatprep.subr.mxu0 0.0
        %2283 = vmatpush1.msra.mxu0 0.0
        %2284 = vmatprep.subr.mxu0 0.0
        %2285 = vmatpush1.msra.mxu0 0.0
        %2286 = vmatprep.subr.mxu0 0.0
        %2287 = vmatpush1.msra.mxu0 0.0
        %2288 = vmatprep.subr.mxu0 0.0
        %2289 = vmatpush1.msra.mxu0 0.0
        %2290 = vmatprep.subr.mxu0 0.0
        %2291 = vmatpush1.msra.mxu0 0.0
        %2292 = vmatprep.subr.mxu0 0.0
        %2293 = vmatpush1.msra.mxu0 0.0
        %2294 = vmatprep.subr.mxu0 0.0
        %2295 = vmatpush1.msra.mxu0 0.0
        %2296 = vmatprep.subr.mxu0 0.0
        %2297 = vmatpush1.msra.mxu0 0.0
        %2298 = vmatprep.subr.mxu0 0.0
        %2299 = vmatpush1.msra.mxu0 0.0
        %2300 = vmatprep.subr.mxu0 0.0
        %2301 = vmatpush1.msra.mxu0 0.0
        %2302 = vmatprep.subr.mxu0 0.0
        %2303 = vmatpush1.msra.mxu0 0.0
        %2304 = vmatprep.subr.mxu0 0.0
        %2305 = vmatpush1.msra.mxu0 0.0
        %2306 = vmatprep.subr.mxu0 0.0
        %2307 = vmatpush1.msra.mxu0 0.0
        %2308 = vmatprep.subr.mxu0 0.0
        %2309 = vmatpush1.msra.mxu0 0.0
        %2310 = vmatprep.subr.mxu0 0.0
        %2311 = vmatpush1.msra.mxu0 0.0
        %2312 = vmatprep.subr.mxu0 0.0
        %2313 = vmatpush1.msra.mxu0 0.0
        %2314 = vmatprep.subr.mxu0 0.0
        %2315 = vmatpush1.msra.mxu0 0.0
        %2316 = vmatprep.subr.mxu0 0.0
        %2317 = vmatpush1.msra.mxu0 0.0
        %2318 = vmatprep.subr.mxu0 0.0
        %2319 = vmatpush1.msra.mxu0 0.0
        %2320 = vmatprep.subr.mxu0 0.0
        %2321 = vmatpush1.msra.mxu0 0.0
        %2322 = vmatprep.subr.mxu0 0.0
        %2323 = vmatpush1.msra.mxu0 0.0
        %2324 = vmatprep.subr.mxu0 0.0
        %2325 = vmatpush1.msra.mxu0 0.0
        %2326 = vmatprep.subr.mxu0 0.0
        %2327 = vmatpush1.msra.mxu0 0.0
        %2328 = vmatprep.subr.mxu0 0.0
        %2329 = vmatpush1.msra.mxu0 0.0
        %2330 = vmatprep.subr.mxu0 0.0
        %2331 = vmatpush1.msra.mxu0 0.0
        %2332 = vmatprep.subr.mxu0 0.0
        %2333 = vmatpush1.msra.mxu0 0.0
        %2334 = vmatprep.subr.mxu0 0.0
        %2335 = vmatpush1.msra.mxu0 0.0
        %2336 = vmatprep.mubr.f32.mxu0 0.0
        %2337 = vmatmul.mubr.f32.gmra.mrb[0].mxu0 %v2270
        %v2338 = vpop.f32.mrb[0].mxu0
        %v2339 = vadd.f32 0.0, %v2338
        %v2340 = vpop.f32.mrb[0].mxu0
        %2341 = vdwg.mxu0
        %s2342 = scalar_lea.vmem %s9, 24
        %v2343 = vld [vmem:[%s2342] sm:$0xff]
        %v2345 = vsel %vm710, %v2339, 0
        %2347 = vmatprep.subr.mxu0 0.0
        %2348 = vmatpush1.msra.mxu0 %v2343
        %2349 = vmatprep.subr.mxu0 0.0
        %2350 = vmatpush1.msra.mxu0 0.0
        %2351 = vmatprep.subr.mxu0 0.0
        %2352 = vmatpush1.msra.mxu0 0.0
        %2353 = vmatprep.subr.mxu0 0.0
        %2354 = vmatpush1.msra.mxu0 0.0
        %2355 = vmatprep.subr.mxu0 0.0
        %2356 = vmatpush1.msra.mxu0 0.0
        %2357 = vmatprep.subr.mxu0 0.0
        %2358 = vmatpush1.msra.mxu0 0.0
        %2359 = vmatprep.subr.mxu0 0.0
        %2360 = vmatpush1.msra.mxu0 0.0
        %2361 = vmatprep.subr.mxu0 0.0
        %2362 = vmatpush1.msra.mxu0 0.0
        %2363 = vmatprep.subr.mxu0 0.0
        %2364 = vmatpush1.msra.mxu0 0.0
        %2365 = vmatprep.subr.mxu0 0.0
        %2366 = vmatpush1.msra.mxu0 0.0
        %2367 = vmatprep.subr.mxu0 0.0
        %2368 = vmatpush1.msra.mxu0 0.0
        %2369 = vmatprep.subr.mxu0 0.0
        %2370 = vmatpush1.msra.mxu0 0.0
        %2371 = vmatprep.subr.mxu0 0.0
        %2372 = vmatpush1.msra.mxu0 0.0
        %2373 = vmatprep.subr.mxu0 0.0
        %2374 = vmatpush1.msra.mxu0 0.0
        %2375 = vmatprep.subr.mxu0 0.0
        %2376 = vmatpush1.msra.mxu0 0.0
        %2377 = vmatprep.subr.mxu0 0.0
        %2378 = vmatpush1.msra.mxu0 0.0
        %2379 = vmatprep.subr.mxu0 0.0
        %2380 = vmatpush1.msra.mxu0 0.0
        %2381 = vmatprep.subr.mxu0 0.0
        %2382 = vmatpush1.msra.mxu0 0.0
        %2383 = vmatprep.subr.mxu0 0.0
        %2384 = vmatpush1.msra.mxu0 0.0
        %2385 = vmatprep.subr.mxu0 0.0
        %2386 = vmatpush1.msra.mxu0 0.0
        %2387 = vmatprep.subr.mxu0 0.0
        %2388 = vmatpush1.msra.mxu0 0.0
        %2389 = vmatprep.subr.mxu0 0.0
        %2390 = vmatpush1.msra.mxu0 0.0
        %2391 = vmatprep.subr.mxu0 0.0
        %2392 = vmatpush1.msra.mxu0 0.0
        %2393 = vmatprep.subr.mxu0 0.0
        %2394 = vmatpush1.msra.mxu0 0.0
        %2395 = vmatprep.subr.mxu0 0.0
        %2396 = vmatpush1.msra.mxu0 0.0
        %2397 = vmatprep.subr.mxu0 0.0
        %2398 = vmatpush1.msra.mxu0 0.0
        %2399 = vmatprep.subr.mxu0 0.0
        %2400 = vmatpush1.msra.mxu0 0.0
        %2401 = vmatprep.subr.mxu0 0.0
        %2402 = vmatpush1.msra.mxu0 0.0
        %2403 = vmatprep.subr.mxu0 0.0
        %2404 = vmatpush1.msra.mxu0 0.0
        %2405 = vmatprep.subr.mxu0 0.0
        %2406 = vmatpush1.msra.mxu0 0.0
        %2407 = vmatprep.subr.mxu0 0.0
        %2408 = vmatpush1.msra.mxu0 0.0
        %2409 = vmatprep.subr.mxu0 0.0
        %2410 = vmatpush1.msra.mxu0 0.0
        %2411 = vmatprep.mubr.f32.mxu0 0.0
        %2412 = vmatmul.mubr.f32.gmra.mrb[0].mxu0 %v2345
        %v2413 = vpop.f32.mrb[0].mxu0
        %v2414 = vadd.f32 0.0, %v2413
        %v2415 = vpop.f32.mrb[0].mxu0
        %2416 = vdwg.mxu0
        %v2417 = vadd.f32 %v1927, %v2414
        %v2418 = vld [vmem:[%s10] sm:$0x1]
        %v2420 = vlaneseq
        %v2421 = vshrl.u32 %v2420, 7
        %v2422 = vsub.s32 0, %v2421
        %v2423 = vrot.slane %v2418, %v2422
        %v2425 = vadd.f32 %v2417, %v2423
        %2426 = vst.msk [vmem:[%s434] sm:$0xff] %vm468, %v2425
        %s2427 = sand.u32 %s284, 1
        %s2428 = scalar_lea.sflag [#allocation3], %s2427
        %s2429 = sand.u32 %s284, 1
        %s2430 = smul.addr %s2429, 8
        %s2431 = scalar_lea.vmem [#allocation2], %s2430
        %s2432 = sand.u32 %s310, 1
        %s2433 = scalar_lea.sflag [#allocation5], %s2432
        %s2434 = sand.u32 %s310, 1
        %s2435 = smul.addr %s2434, 32
        %s2436 = scalar_lea.vmem [#allocation4], %s2435
        // Predicated region
        $region65: #{multi_head_attention.1} parent=63 // pred_check
          %p2437 = pneg %p294
        $region66: #{multi_head_attention.1} parent=63 // pred_check_branch
          %2439 = sbr.rel (%p2437) target = $region68
        $region67: #{multi_head_attention.1} parent=63 // pred_region
          %s2441 = ssub.s32 128, 128
          %2442 = vsyncadd %s2428, %s2441
          %s2443 = smul.addr %s30, 128
          %s2444 = scalar_lea.hbm %s11, %s2443
          %s2446 = sshll.u32 %s2431, 4
          %s2447 = int_to_ptr.vmem [resolvable:$true] %s2446
          %2449 = dma.vmem_to_hbm [thread:$0]  %s2447, 128, %s2444, %s2428
        $region68: #{multi_head_attention.1} parent=63 // pred_fallthru
          _
        // Predicated region
        $region69: #{multi_head_attention.1} parent=63 // pred_check
          %p2450 = pneg %p320
        $region70: #{multi_head_attention.1} parent=63 // pred_check_branch
          %2452 = sbr.rel (%p2450) target = $region72
        $region71: #{multi_head_attention.1} parent=63 // pred_region
          %s2454 = ssub.s32 512, 512
          %2455 = vsyncadd %s2433, %s2454
          %s2456 = smul.addr %s30, 4
          %s2457 = smul.addr %s2456, 128
          %s2458 = scalar_lea.hbm %s12, %s2457
          %s2459 = sshll.u32 %s2436, 4
          %s2460 = int_to_ptr.vmem [resolvable:$true] %s2459
          %2465 = dma.vmem_to_hbm [thread:$0]  %s2460, 512, %s2458, %s2433, 128, 128, 8
        $region72: #{multi_head_attention.1} parent=63 // pred_fallthru
          _
      $region64: #{multi_head_attention.1} parent=5 // pred_fallthru
        _
      %p2466 = scmp.le.s32.totalorder 2, %s25
      // Predicated region
      $region73: #{multi_head_attention.1} parent=5 // pred_check
        %p2467 = pneg %p2466
      $region74: #{multi_head_attention.1} parent=5 // pred_check_branch
        %2469 = sbr.rel (%p2467) target = $region76
      $region75: #{multi_head_attention.1} parent=5 // pred_region
        %s2470 = ssub.s32 %s25, 2
        // Predicated region
        $region77: #{multi_head_attention.1} parent=75 // pred_check
          %p2471 = pneg %p300
        $region78: #{multi_head_attention.1} parent=75 // pred_check_branch
          %2473 = sbr.rel (%p2471) target = $region80
        $region79: #{multi_head_attention.1} parent=75 // pred_region
          %s2474 = sand.u32 %s285, 1
          %s2475 = scalar_lea.sflag [#allocation3], %s2474
          %s2476 = sand.u32 %s285, 1
          %s2477 = smul.addr %s2476, 8
          %s2478 = scalar_lea.vmem [#allocation2], %s2477
          %2479 = dma.done %s2475, 128
        $region80: #{multi_head_attention.1} parent=75 // pred_fallthru
          _
        // Predicated region
        $region81: #{multi_head_attention.1} parent=75 // pred_check
          %p2480 = pneg %p326
        $region82: #{multi_head_attention.1} parent=75 // pred_check_branch
          %2482 = sbr.rel (%p2480) target = $region84
        $region83: #{multi_head_attention.1} parent=75 // pred_region
          %s2483 = sand.u32 %s311, 1
          %s2484 = scalar_lea.sflag [#allocation5], %s2483
          %s2485 = sand.u32 %s311, 1
          %s2486 = smul.addr %s2485, 32
          %s2487 = scalar_lea.vmem [#allocation4], %s2486
          %2488 = dma.done %s2484, 512
        $region84: #{multi_head_attention.1} parent=75 // pred_fallthru
          _
      $region76: #{multi_head_attention.1} parent=5 // pred_fallthru
        _
    $region6: #{multi_head_attention.1} parent=1 // loop_footer
      %s29 = sadd.s32 1, %s25
    $region7: #{multi_head_attention.1} parent=1 // loop_footer_branch
      %24 = sbr.rel target = $region3
    $region8: #{multi_head_attention.1} parent=1 // loop_exit
      _
    %2489 = vsyncpa [#allocation3], 1
    %s2490 = scalar_lea.sflag [#allocation3], 1
    %2491 = vsyncpa %s2490, 1
    %2492 = vsyncpa [#allocation5], 1
    %s2493 = scalar_lea.sflag [#allocation5], 1
    %2494 = vsyncpa %s2493, 1

</llo_original>
